<compile_context>
chip_gen: v6e
topology: v6e:2x2x1
jax: 0.10.0
libtpu: 0.0.40
codegen_flags: <defaults>
</compile_context>

<pallas_src>
import functools
import math

import jax
import jax.numpy as jnp
from jax.experimental import pallas as pl
from jax.experimental.pallas import tpu as pltpu


def _conv3x3_gelu_kernel(x_ref, xup_ref, xdn_ref, w_ref, o_ref, slab_ref, *,
                         approximate_gelu):
    # x_ref   : (1, TH, W, C)   current H tile
    # xup_ref : (1, 1,  W, C)   image row directly above the tile (clamped)
    # xdn_ref : (1, 1,  W, C)   image row directly below the tile (clamped)
    # w_ref   : (3, 3*C, C)     per-dy im2col weights, K ordered (dx, c_in)
    # o_ref   : (1, TH*W, C)    output tile (lane-dense when C % 128 == 0)
    # slab_ref: (TH+2, W+2, C)  VMEM scratch: zero-padded input slab
    th = x_ref.shape[1]
    wd = x_ref.shape[2]
    c = x_ref.shape[3]

    i = pl.program_id(1)
    n_h = pl.num_programs(1)

    # ---- Build the padded slab in VMEM scratch (vst slot, overlaps MXU) ----
    # Zero the two W-pad columns every step (scratch is per-core and
    # uninitialized; 2 x (TH+2, 1, C) narrow stores are tiny).
    zcol = jnp.zeros((th + 2, 1, c), dtype=slab_ref.dtype)
    slab_ref[:, 0:1, :] = zcol
    slab_ref[:, wd + 1:wd + 2, :] = zcol

    # H halo rows: the single row above / below this tile; zero at the border.
    row_up = jnp.where(i > 0, xup_ref[0, 0:1, :, :], 0.0)          # (1, W, C)
    row_dn = jnp.where(i < n_h - 1, xdn_ref[0, 0:1, :, :], 0.0)    # (1, W, C)

    slab_ref[0:1, 1:wd + 1, :] = row_up.astype(slab_ref.dtype)
    slab_ref[1:th + 1, 1:wd + 1, :] = x_ref[0].astype(slab_ref.dtype)
    slab_ref[th + 1:th + 2, 1:wd + 1, :] = row_dn.astype(slab_ref.dtype)

    # ---- 3 x (K = 3C) MXU matmuls, f32 accumulation --------------------------
    acc = None
    for dy in range(3):
        # Three dx taps are read back from the slab at static offsets and
        # joined along the (lane) channel axis -- free vreg stacking when
        # C % 128 == 0.  K order (dx, c_in) matches the weight reshape.
        taps = [slab_ref[dy:dy + th, dx:dx + wd, :] for dx in range(3)]
        lhs = jnp.concatenate(taps, axis=-1)                       # (TH, W, 3C)
        lhs = lhs.reshape(th * wd, 3 * c).astype(w_ref.dtype)
        # Note: default f32 x f32 dot precision in Mosaic is multi-pass bf16
        # (~f32); tolerances in the test account for this.
        part = jnp.dot(lhs, w_ref[dy], preferred_element_type=jnp.float32)
        acc = part if acc is None else acc + part                  # (TH*W, C)

    # ---- GELU -----------------------------------------------------------------
    if approximate_gelu:
        # Opt-in: tanh approximation runs on the EUP slot (overlaps the MXU).
        y = jax.nn.gelu(acc, approximate=True)
    else:
        # Exact erf GELU, matching nn.GELU() default approximate='none'.
        inv_sqrt2 = jnp.float32(1.0 / math.sqrt(2.0))
        y = 0.5 * acc * (1.0 + jax.lax.erf(acc * inv_sqrt2))

    o_ref[...] = y[None, :, :].astype(o_ref.dtype)


def _vmem_capacity_bytes() -> int:
    """Physical per-core VMEM with a conservative fallback (v7x: 64 MiB)."""
    try:
        return int(pltpu.get_tpu_info().vmem_capacity_bytes)
    except Exception:
        return 64 * 1024 * 1024


def _vmem_step_estimate(tile_h, w, c):
    """Rough per-step VMEM footprint in bytes (double-buffered IO + temps)."""
    tile = tile_h * w * c * 4
    slab = (tile_h + 2) * (w + 2) * c * 4
    weights = 2 * 9 * c * c * 4
    # ~2x in + ~2x out (double buffered) + 3C im2col LHS (3x) + acc/partials
    # + headroom  =>  ~12 tile-equivalents.
    return 12 * tile + slab + weights


def _pick_tile_h(b, h, w, c, budget_bytes):
    """Largest H tile fitting the VMEM budget, shrunk (but keeping tiles
    >= ~32 KiB) until the grid has >= 8 steps so both v7x TensorCores and the
    DMA pipeline stay fed."""
    def ok(t):
        return h % t == 0 and ((t * w) % 8 == 0 or t == h)

    cands = sorted(t for t in range(1, h + 1) if ok(t))
    fitting = [t for t in cands if _vmem_step_estimate(t, w, c) <= budget_bytes]
    t = fitting[-1] if fitting else cands[0]
    while b * (h // t) < 8:
        smaller = [s for s in cands if s < t and s * w * c * 4 >= 32 * 1024]
        if not smaller:
            break
        t = smaller[-1]
    return t


@functools.partial(
    jax.jit, static_argnames=("tile_h", "use_bf16_matmul", "approximate_gelu"))
def conv_module_forward(x_nhwc, w_oihw, *, tile_h=None,
                        use_bf16_matmul=False, approximate_gelu=False):
    """Equivalent of ConvModule.forward.

    x_nhwc : (B, H, W, C) float32
    w_oihw : (C, C, 3, 3) float32 (PyTorch Conv2d weight layout: O, I, kH, kW)
    returns (B, H, W, C) float32

    `use_bf16_matmul` / `approximate_gelu` are numerics-changing opt-ins
    (bf16 MXU operands with f32 accumulation / tanh GELU on the EUP).
    """
    B, H, W, C = x_nhwc.shape
    assert w_oihw.shape == (C, C, 3, 3)

    vmem_cap = _vmem_capacity_bytes()
    # Stay clear of v7x's 64 MiB physical VMEM; raise the scoped limit above
    # the 32 MiB default where the part has 128 MiB (v5e / v6e).
    vmem_limit = (64 * 1024 * 1024 if vmem_cap >= 128 * 1024 * 1024
                  else 48 * 1024 * 1024)
    tile_budget = 24 * 1024 * 1024

    if tile_h is None:
        tile_h = _pick_tile_h(B, H, W, C, tile_budget)
    assert H % tile_h == 0, "tile_h must divide H"
    assert (tile_h * W) % 8 == 0 or tile_h == H, \
        "tile_h * W must be a multiple of 8 (sublane) unless tile_h == H"

    n_h = H // tile_h

    # (O, I, kH, kW) -> (kH, kW, I, O) -> (3, 3*C_in, C_out); per-dy K order
    # (dx, c_in) matches the in-kernel lane concatenation order.
    w_k = jnp.transpose(w_oihw, (2, 3, 1, 0)).reshape(3, 3 * C, C)
    if use_bf16_matmul:
        w_k = w_k.astype(jnp.bfloat16)

    cost = pl.CostEstimate(
        flops=2 * B * H * W * C * C * 9,
        transcendentals=B * H * W * C,
        bytes_accessed=4 * (2 * B * H * W * C + 9 * C * C),
    )

    kernel = functools.partial(_conv3x3_gelu_kernel,
                               approximate_gelu=approximate_gelu)

    out = pl.pallas_call(
        kernel,
        out_shape=jax.ShapeDtypeStruct((B, H * W, C), x_nhwc.dtype),
        grid_spec=pltpu.PrefetchScalarGridSpec(
            num_scalar_prefetch=0,
            grid=(B, n_h),
            in_specs=[
                # current H tile
                pl.BlockSpec((1, tile_h, W, C), lambda b, i: (b, i, 0, 0)),
                # single image row just above the tile (clamped at the top)
                pl.BlockSpec(
                    (1, 1, W, C),
                    lambda b, i: (b, jnp.maximum(i * tile_h - 1, 0), 0, 0)),
                # single image row just below the tile (clamped at the bottom)
                pl.BlockSpec(
                    (1, 1, W, C),
                    lambda b, i: (b, jnp.minimum((i + 1) * tile_h, H - 1), 0, 0)),
                # per-dy im2col weights (whole array, resident)
                pl.BlockSpec((3, 3 * C, C), lambda b, i: (0, 0, 0)),
            ],
            out_specs=pl.BlockSpec((1, tile_h * W, C), lambda b, i: (b, i, 0)),
            scratch_shapes=[pltpu.VMEM((tile_h + 2, W + 2, C), jnp.float32)],
        ),
        compiler_params=pltpu.CompilerParams(
            dimension_semantics=("parallel", "parallel"),
            vmem_limit_bytes=vmem_limit,
        ),
        cost_estimate=cost,
    )(x_nhwc, x_nhwc, x_nhwc, w_k)

    return out.reshape(B, H, W, C)


def _reference(x, w_oihw, *, approximate=False):
    ref = jax.lax.conv_general_dilated(
        x, jnp.transpose(w_oihw, (2, 3, 1, 0)), (1, 1), "SAME",
        dimension_numbers=("NHWC", "HWIO", "NHWC"),
        precision=jax.lax.Precision.HIGHEST)
    if approximate:
        return jax.nn.gelu(ref, approximate=True)
    return 0.5 * ref * (1.0 + jax.lax.erf(ref * jnp.float32(1.0 / math.sqrt(2.0))))


def _make_inputs(key, b, h, w, c):
    kx, kw = jax.random.split(key)
    x = jax.random.normal(kx, (b, h, w, c), dtype=jnp.float32)
    fan_in = c * 9
    bound = 1.0 / math.sqrt(fan_in)      # PyTorch Conv2d default-init scale
    wgt = jax.random.uniform(kw, (c, c, 3, 3), jnp.float32, -bound, bound)
    return x, wgt


if __name__ == "__main__":
    k1, k2 = jax.random.split(jax.random.PRNGKey(0))

    # 1) Realistic lane-dense path: C = 128 (C % 128 == 0), auto tile_h
    #    (picker shrinks tile_h for grid parallelism -> borders + interior).
    x1, w1 = _make_inputs(k1, 2, 16, 16, 128)
    out1 = jax.block_until_ready(conv_module_forward(x1, w1))
    assert out1.shape == x1.shape
    ref1 = _reference(x1, w1)
    assert bool(jnp.allclose(out1, ref1, atol=3e-3, rtol=3e-2)), \
        f"C=128 path mismatch: {float(jnp.max(jnp.abs(out1 - ref1)))}"

    # 2) Small-C fallback path (C < 128, masked lane stores), explicit tile_h.
    x2, w2 = _make_inputs(k2, 2, 16, 8, 32)
    out2 = jax.block_until_ready(conv_module_forward(x2, w2, tile_h=8))
    assert out2.shape == x2.shape
    ref2 = _reference(x2, w2)
    assert bool(jnp.allclose(out2, ref2, atol=2e-3, rtol=2e-2)), \
        f"C=32 path mismatch: {float(jnp.max(jnp.abs(out2 - ref2)))}"

    # 3) Opt-in fast path: bf16 MXU operands + tanh GELU (numerics-changing).
    out3 = jax.block_until_ready(
        conv_module_forward(x1, w1, use_bf16_matmul=True, approximate_gelu=True))
    ref3 = _reference(x1, w1, approximate=True)
    assert bool(jnp.allclose(out3, ref3, atol=3e-2, rtol=3e-2)), \
        f"bf16/tanh path mismatch: {float(jnp.max(jnp.abs(out3 - ref3)))}"

    print("KERNEL_OK")
</pallas_src>

<mosaic_0001>
module attributes {stable_mosaic.version = 11 : i64} {
  func.func @_conv3x3_gelu_kernel(%arg0: i32, %arg1: i32, %arg2: memref<1x4x16x128xf32, #tpu.memory_space<vmem>>, %arg3: memref<1x1x16x128xf32, #tpu.memory_space<vmem>>, %arg4: memref<1x1x16x128xf32, #tpu.memory_space<vmem>>, %arg5: memref<3x384x128xf32, #tpu.memory_space<vmem>>, %arg6: memref<1x64x128xf32, #tpu.memory_space<vmem>>, %arg7: memref<6x18x128xf32, #tpu.memory_space<vmem>>) attributes {dimension_semantics = [#tpu.dimension_semantics<parallel>, #tpu.dimension_semantics<parallel>], iteration_bounds = array<i64: 2, 4>, scalar_prefetch = 0 : i64, scratch_operands = 1 : i64, tpu.core_type = #tpu.core_type<tc>, window_params = [{transform_indices = @transform_0, window_bounds = array<i64: 1, 4, 16, 128>}, {transform_indices = @transform_1, window_bounds = array<i64: 1, 1, 16, 128>}, {transform_indices = @transform_2, window_bounds = array<i64: 1, 1, 16, 128>}, {pipeline_mode = #tpu.pipeline_mode<synchronous>, transform_indices = @transform_3, window_bounds = array<i64: 3, 384, 128>}, {transform_indices = @transform_4, window_bounds = array<i64: 1, 64, 128>}]} {
    %cst = arith.constant 0.000000e+00 : f32
    %0 = vector.broadcast %cst : f32 to vector<6x1x128xf32>
    %c0 = arith.constant 0 : index
    %c0_0 = arith.constant 0 : index
    %c0_1 = arith.constant 0 : index
    %1 = vector.load %arg7[%c0, %c0_0, %c0_1] : memref<6x18x128xf32, #tpu.memory_space<vmem>>, vector<6x1x128xf32>
    tpu.vector_store %arg7[%c0, %c0_0, %c0_1], %0 {strides = array<i32>} : memref<6x18x128xf32, #tpu.memory_space<vmem>>, vector<6x1x128xf32>,
    %c0_2 = arith.constant 0 : index
    %c17 = arith.constant 17 : index
    %c0_3 = arith.constant 0 : index
    %2 = vector.load %arg7[%c0_2, %c17, %c0_3] : memref<6x18x128xf32, #tpu.memory_space<vmem>>, vector<6x1x128xf32>
    tpu.vector_store %arg7[%c0_2, %c17, %c0_3], %0 {strides = array<i32>} : memref<6x18x128xf32, #tpu.memory_space<vmem>>, vector<6x1x128xf32>,
    %c0_i32 = arith.constant 0 : i32
    %3 = arith.cmpi sgt, %arg1, %c0_i32 : i32
    %c0_4 = arith.constant 0 : index
    %c0_5 = arith.constant 0 : index
    %c0_6 = arith.constant 0 : index
    %c0_7 = arith.constant 0 : index
    %4 = vector.load %arg3[%c0_4, %c0_5, %c0_6, %c0_7] : memref<1x1x16x128xf32, #tpu.memory_space<vmem>>, vector<1x1x16x128xf32>
    %5 = vector.shape_cast %4 : vector<1x1x16x128xf32> to vector<1x16x128xf32>
    %cst_8 = arith.constant 0.000000e+00 : f32
    %6 = vector.broadcast %cst_8 : f32 to vector<1x16x128xf32>
    %7 = arith.select %3, %5, %6 : vector<1x16x128xf32>
    %c3_i32 = arith.constant 3 : i32
    %8 = arith.cmpi slt, %arg1, %c3_i32 : i32
    %c0_9 = arith.constant 0 : index
    %c0_10 = arith.constant 0 : index
    %c0_11 = arith.constant 0 : index
    %c0_12 = arith.constant 0 : index
    %9 = vector.load %arg4[%c0_9, %c0_10, %c0_11, %c0_12] : memref<1x1x16x128xf32, #tpu.memory_space<vmem>>, vector<1x1x16x128xf32>
    %10 = vector.shape_cast %9 : vector<1x1x16x128xf32> to vector<1x16x128xf32>
    %cst_13 = arith.constant 0.000000e+00 : f32
    %11 = vector.broadcast %cst_13 : f32 to vector<1x16x128xf32>
    %12 = arith.select %8, %10, %11 : vector<1x16x128xf32>
    %c0_14 = arith.constant 0 : index
    %c1 = arith.constant 1 : index
    %c0_15 = arith.constant 0 : index
    %13 = vector.load %arg7[%c0_14, %c1, %c0_15] : memref<6x18x128xf32, #tpu.memory_space<vmem>>, vector<1x16x128xf32>
    tpu.vector_store %arg7[%c0_14, %c1, %c0_15], %7 {strides = array<i32>} : memref<6x18x128xf32, #tpu.memory_space<vmem>>, vector<1x16x128xf32>,
    %c0_16 = arith.constant 0 : index
    %c0_17 = arith.constant 0 : index
    %c0_18 = arith.constant 0 : index
    %c0_19 = arith.constant 0 : index
    %14 = vector.load %arg2[%c0_16, %c0_17, %c0_18, %c0_19] : memref<1x4x16x128xf32, #tpu.memory_space<vmem>>, vector<1x4x16x128xf32>
    %15 = vector.shape_cast %14 : vector<1x4x16x128xf32> to vector<4x16x128xf32>
    %c1_20 = arith.constant 1 : index
    %c1_21 = arith.constant 1 : index
    %c0_22 = arith.constant 0 : index
    %16 = vector.load %arg7[%c1_20, %c1_21, %c0_22] : memref<6x18x128xf32, #tpu.memory_space<vmem>>, vector<4x16x128xf32>
    tpu.vector_store %arg7[%c1_20, %c1_21, %c0_22], %15 {strides = array<i32>} : memref<6x18x128xf32, #tpu.memory_space<vmem>>, vector<4x16x128xf32>,
    %c5 = arith.constant 5 : index
    %c1_23 = arith.constant 1 : index
    %c0_24 = arith.constant 0 : index
    %17 = vector.load %arg7[%c5, %c1_23, %c0_24] : memref<6x18x128xf32, #tpu.memory_space<vmem>>, vector<1x16x128xf32>
    tpu.vector_store %arg7[%c5, %c1_23, %c0_24], %12 {strides = array<i32>} : memref<6x18x128xf32, #tpu.memory_space<vmem>>, vector<1x16x128xf32>,
    %c0_25 = arith.constant 0 : index
    %c0_26 = arith.constant 0 : index
    %c0_27 = arith.constant 0 : index
    %18 = vector.load %arg7[%c0_25, %c0_26, %c0_27] : memref<6x18x128xf32, #tpu.memory_space<vmem>>, vector<4x16x128xf32>
    %c0_28 = arith.constant 0 : index
    %c1_29 = arith.constant 1 : index
    %c0_30 = arith.constant 0 : index
    %19 = vector.load %arg7[%c0_28, %c1_29, %c0_30] : memref<6x18x128xf32, #tpu.memory_space<vmem>>, vector<4x16x128xf32>
    %c0_31 = arith.constant 0 : index
    %c2 = arith.constant 2 : index
    %c0_32 = arith.constant 0 : index
    %20 = vector.load %arg7[%c0_31, %c2, %c0_32] : memref<6x18x128xf32, #tpu.memory_space<vmem>>, vector<4x16x128xf32>
    %21 = tpu.concatenate %18, %19, %20 in 2 : vector<4x16x128xf32>, vector<4x16x128xf32>, vector<4x16x128xf32> -> vector<4x16x384xf32>
    %22 = vector.shape_cast %21 : vector<4x16x384xf32> to vector<64x384xf32>
    %c0_33 = arith.constant 0 : index
    %c0_34 = arith.constant 0 : index
    %c0_35 = arith.constant 0 : index
    %23 = vector.load %arg5[%c0_33, %c0_34, %c0_35] : memref<3x384x128xf32, #tpu.memory_space<vmem>>, vector<1x384x128xf32>
    %24 = vector.shape_cast %23 : vector<1x384x128xf32> to vector<384x128xf32>
    %cst_36 = arith.constant dense<0.000000e+00> : vector<64x128xf32>
    %25 = tpu.matmul %22, %24, %cst_36 {dimension_numbers = #tpu.dot_dimension_numbers<[1], [0], [0], [1], [0, 0, 1, 1], [], []>} : vector<64x384xf32>, vector<384x128xf32>, vector<64x128xf32> -> vector<64x128xf32>
    %c1_37 = arith.constant 1 : index
    %c0_38 = arith.constant 0 : index
    %c0_39 = arith.constant 0 : index
    %26 = vector.load %arg7[%c1_37, %c0_38, %c0_39] : memref<6x18x128xf32, #tpu.memory_space<vmem>>, vector<4x16x128xf32>
    %c1_40 = arith.constant 1 : index
    %c1_41 = arith.constant 1 : index
    %c0_42 = arith.constant 0 : index
    %27 = vector.load %arg7[%c1_40, %c1_41, %c0_42] : memref<6x18x128xf32, #tpu.memory_space<vmem>>, vector<4x16x128xf32>
    %c1_43 = arith.constant 1 : index
    %c2_44 = arith.constant 2 : index
    %c0_45 = arith.constant 0 : index
    %28 = vector.load %arg7[%c1_43, %c2_44, %c0_45] : memref<6x18x128xf32, #tpu.memory_space<vmem>>, vector<4x16x128xf32>
    %29 = tpu.concatenate %26, %27, %28 in 2 : vector<4x16x128xf32>, vector<4x16x128xf32>, vector<4x16x128xf32> -> vector<4x16x384xf32>
    %30 = vector.shape_cast %29 : vector<4x16x384xf32> to vector<64x384xf32>
    %c1_46 = arith.constant 1 : index
    %c0_47 = arith.constant 0 : index
    %c0_48 = arith.constant 0 : index
    %31 = vector.load %arg5[%c1_46, %c0_47, %c0_48] : memref<3x384x128xf32, #tpu.memory_space<vmem>>, vector<1x384x128xf32>
    %32 = vector.shape_cast %31 : vector<1x384x128xf32> to vector<384x128xf32>
    %cst_49 = arith.constant dense<0.000000e+00> : vector<64x128xf32>
    %33 = tpu.matmul %30, %32, %cst_49 {dimension_numbers = #tpu.dot_dimension_numbers<[1], [0], [0], [1], [0, 0, 1, 1], [], []>} : vector<64x384xf32>, vector<384x128xf32>, vector<64x128xf32> -> vector<64x128xf32>
    %34 = arith.addf %25, %33 : vector<64x128xf32>
    %c2_50 = arith.constant 2 : index
    %c0_51 = arith.constant 0 : index
    %c0_52 = arith.constant 0 : index
    %35 = vector.load %arg7[%c2_50, %c0_51, %c0_52] : memref<6x18x128xf32, #tpu.memory_space<vmem>>, vector<4x16x128xf32>
    %c2_53 = arith.constant 2 : index
    %c1_54 = arith.constant 1 : index
    %c0_55 = arith.constant 0 : index
    %36 = vector.load %arg7[%c2_53, %c1_54, %c0_55] : memref<6x18x128xf32, #tpu.memory_space<vmem>>, vector<4x16x128xf32>
    %c2_56 = arith.constant 2 : index
    %c2_57 = arith.constant 2 : index
    %c0_58 = arith.constant 0 : index
    %37 = vector.load %arg7[%c2_56, %c2_57, %c0_58] : memref<6x18x128xf32, #tpu.memory_space<vmem>>, vector<4x16x128xf32>
    %38 = tpu.concatenate %35, %36, %37 in 2 : vector<4x16x128xf32>, vector<4x16x128xf32>, vector<4x16x128xf32> -> vector<4x16x384xf32>
    %39 = vector.shape_cast %38 : vector<4x16x384xf32> to vector<64x384xf32>
    %c2_59 = arith.constant 2 : index
    %c0_60 = arith.constant 0 : index
    %c0_61 = arith.constant 0 : index
    %40 = vector.load %arg5[%c2_59, %c0_60, %c0_61] : memref<3x384x128xf32, #tpu.memory_space<vmem>>, vector<1x384x128xf32>
    %41 = vector.shape_cast %40 : vector<1x384x128xf32> to vector<384x128xf32>
    %cst_62 = arith.constant dense<0.000000e+00> : vector<64x128xf32>
    %42 = tpu.matmul %39, %41, %cst_62 {dimension_numbers = #tpu.dot_dimension_numbers<[1], [0], [0], [1], [0, 0, 1, 1], [], []>} : vector<64x384xf32>, vector<384x128xf32>, vector<64x128xf32> -> vector<64x128xf32>
    %43 = arith.addf %34, %42 : vector<64x128xf32>
    %cst_63 = arith.constant 5.000000e-01 : f32
    %44 = vector.broadcast %cst_63 : f32 to vector<64x128xf32>
    %45 = arith.mulf %44, %43 : vector<64x128xf32>
    %cst_64 = arith.constant 0.707106769 : f32
    %46 = vector.broadcast %cst_64 : f32 to vector<64x128xf32>
    %47 = arith.mulf %43, %46 : vector<64x128xf32>
    %48 = math.erf %47 : vector<64x128xf32>
    %cst_65 = arith.constant 1.000000e+00 : f32
    %49 = vector.broadcast %cst_65 : f32 to vector<64x128xf32>
    %50 = arith.addf %49, %48 : vector<64x128xf32>
    %51 = arith.mulf %45, %50 : vector<64x128xf32>
    %52 = vector.shape_cast %51 : vector<64x128xf32> to vector<1x64x128xf32>
    %c0_66 = arith.constant 0 : index
    %c0_67 = arith.constant 0 : index
    %c0_68 = arith.constant 0 : index
    %53 = vector.load %arg6[%c0_66, %c0_67, %c0_68] : memref<1x64x128xf32, #tpu.memory_space<vmem>>, vector<1x64x128xf32>
    tpu.vector_store %arg6[%c0_66, %c0_67, %c0_68], %52 {strides = array<i32>} : memref<1x64x128xf32, #tpu.memory_space<vmem>>, vector<1x64x128xf32>,
    return
  }
  func.func @transform_0(%arg0: i32, %arg1: i32) -> (i32, i32, i32, i32) {
    %c0_i32 = arith.constant 0 : i32
    %c0_i32_0 = arith.constant 0 : i32
    %c0_i32_1 = arith.constant 0 : i32
    return %arg0, %arg1, %c0_i32, %c0_i32_0 : i32, i32, i32, i32
  }
  func.func @transform_1(%arg0: i32, %arg1: i32) -> (i32, i32, i32, i32) {
    %c4_i32 = arith.constant 4 : i32
    %0 = arith.muli %arg1, %c4_i32 : i32
    %c1_i32 = arith.constant 1 : i32
    %1 = arith.subi %0, %c1_i32 : i32
    %c0_i32 = arith.constant 0 : i32
    %2 = arith.maxsi %1, %c0_i32 : i32
    %c0_i32_0 = arith.constant 0 : i32
    %c0_i32_1 = arith.constant 0 : i32
    %c0_i32_2 = arith.constant 0 : i32
    return %arg0, %2, %c0_i32_0, %c0_i32_1 : i32, i32, i32, i32
  }
  func.func @transform_2(%arg0: i32, %arg1: i32) -> (i32, i32, i32, i32) {
    %c1_i32 = arith.constant 1 : i32
    %0 = arith.addi %arg1, %c1_i32 : i32
    %c4_i32 = arith.constant 4 : i32
    %1 = arith.muli %0, %c4_i32 : i32
    %c15_i32 = arith.constant 15 : i32
    %2 = arith.minsi %1, %c15_i32 : i32
    %c0_i32 = arith.constant 0 : i32
    %c0_i32_0 = arith.constant 0 : i32
    %c0_i32_1 = arith.constant 0 : i32
    return %arg0, %2, %c0_i32, %c0_i32_0 : i32, i32, i32, i32
  }
  func.func @transform_3(%arg0: i32, %arg1: i32) -> (i32, i32, i32) {
    %c0_i32 = arith.constant 0 : i32
    %c0_i32_0 = arith.constant 0 : i32
    %c0_i32_1 = arith.constant 0 : i32
    %c0_i32_2 = arith.constant 0 : i32
    return %c0_i32, %c0_i32_0, %c0_i32_1 : i32, i32, i32
  }
  func.func @transform_4(%arg0: i32, %arg1: i32) -> (i32, i32, i32) {
    %c0_i32 = arith.constant 0 : i32
    %c0_i32_0 = arith.constant 0 : i32
    return %arg0, %arg1, %c0_i32 : i32, i32, i32
  }
}

</mosaic_0001>

<llo_original>
// kernel: conv_module_forward.1
$region0: #{conv_module_forward.1}
  #allocation0 [shape = 'u32[]', space=smem, size = 0x4, offset = 0x4, fixed_abs, tag = 'smem constant byte address 0x4 - core index']
  #allocation1 [shape = 'u32[144,128]{1,0:T(1,128)}', space=vmem, size = 0x12000, scoped, tag = 'internal scratch']
  #allocation2 [shape = 'f32[6,18,128]{2,1,0:T(8,128)}', space=vmem, size = 0x12000, scoped, tag = 'scratch operand']
  %s0 = inlined_call_operand.vmem [shape: f32[2,16,16,128], index: 0, kind: input, shape index: {}, may-alias: {0,1,2}]
  %s1 = inlined_call_operand.vmem [shape: f32[2,16,16,128], index: 1, kind: input, shape index: {}, may-alias: {0,1,2}]
  %s2 = inlined_call_operand.vmem [shape: f32[2,16,16,128], index: 2, kind: input, shape index: {}, may-alias: {0,1,2}]
  %s3 = inlined_call_operand.vmem [shape: f32[3,384,128], index: 3, kind: input, shape index: {}]
  %s4 = inlined_call_operand.hbm [shape: f32[2,256,128], index: 4, kind: output, shape index: {}]
  %s5 = sld [smem:[#allocation0]]
  $region49: #{conv_module_forward.1} parent=0
    _
  %s7 = ssub.s32 1, %s5
  %s8 = scalar_select 0, %s7, %s5
  $region1: #{conv_module_forward.1} parent=0
    #allocation3 [shape = 'u8[65536]{0}', space=vmem, size = 0x10000, scoped, tag = 'output window, operand 0']
    #allocation4 [shape = 's32[2]{0}', space=sflag, size = 0x8, scoped, tag = 'scoped memory for conv_module_forward.1']
    %9 = vsyncpa [#allocation4], 0
    %s10 = scalar_lea.sflag [#allocation4], 1
    %11 = vsyncpa %s10, 0
    loop: start=0, step=1, limit=10
    $region2: #{conv_module_forward.1} parent=1 // loop_pre_header
      _
    $region3: #{conv_module_forward.1} parent=1 // loop_header
      %s13 = sphi 0, %s17
      %p14 = scmp.ge.s32.totalorder %s13, 10
      %s20 = sphi 0, %s32
      %s21 = sphi 0, %s28
      %s22 = sphi 0, %s20
      %s23 = sphi 0, %s21
      %s24 = sphi 0, %s22
      %s25 = sphi 0, %s23
      %s37 = sphi 0, %s39
      %s40 = sphi 0, %s37
      %s41 = sphi 0, %s40
      %s57 = sphi 0, %s41
      %s73 = sphi 0, %s75
      %s76 = sphi 0, %s73
      %s77 = sphi 0, %s76
      %s93 = sphi 0, %s77
      %s109 = sphi 0, %s111
      %s112 = sphi 0, %s109
      %s113 = sphi 0, %s112
      %s129 = sphi 0, %s113
      %s133 = sphi 0, %s133
      %s135 = sphi 0, %s133
      %s136 = sphi 0, %s135
      %s150 = sphi 0, %s136
      %s158 = sphi 0, %s160
      %s161 = sphi 0, %s158
      %s162 = sphi 0, %s161
      %s178 = sphi 0, %s162
    $region4: #{conv_module_forward.1} parent=1 // loop_header_branch
      %16 = sbr.rel (%p14) target = $region8
    $region5: #{conv_module_forward.1} parent=1 // loop_body
      %s18 = ssub.s32 %s13, 1
      %s19 = ssub.s32 %s13, 2
      %s26 = sadd.s32 1, %s21
      %p27 = scmp.ge.s32.totalorder %s26, 4
      %s28 = scalar_select %p27, 0, %s26
      %s29 = sadd.s32 1, %s20
      %s30 = scalar_select %p27, %s29, %s20
      %p31 = scmp.ge.s32.totalorder %s30, 2
      %s32 = scalar_select %p31, 0, %s30
      %s33 = ssub.s32 %s20, %s32
      %s34 = ssub.s32 %s21, %s28
      %s35 = sor.u32 %s33, %s34
      %p36 = scmp.eq.s32.totalorder %s35, 0
      %s38 = sadd.s32 %s37, 1
      %s39 = scalar_select %p36, %s37, %s38
      %p42 = pneg %p36
      %p43 = scmp.eq.s32.totalorder %s13, 7
      %p44 = por %p42, %p43
      %p45 = scmp.ne.s32.totalorder %s37, %s40
      %p46 = scmp.eq.s32.totalorder %s13, 0
      %p47 = por %p45, %p46
      %p48 = scmp.ne.s32.totalorder %s37, %s40
      %p49 = scmp.eq.s32.totalorder %s18, 7
      %p50 = por %p48, %p49
      %p51 = scmp.ne.s32.totalorder %s40, %s41
      %p52 = scmp.eq.s32.totalorder %s18, 0
      %p53 = por %p51, %p52
      %p54 = scmp.ne.s32.totalorder %s40, %s41
      %p55 = scmp.eq.s32.totalorder %s19, 7
      %p56 = por %p54, %p55
      %p58 = scmp.ne.s32.totalorder %s41, %s57
      %p59 = scmp.eq.s32.totalorder %s19, 0
      %p60 = por %p58, %p59
      %s61 = smul.u32 %s21, 4
      %s62 = ssub.s32 %s61, 1
      %p63 = scmp.gt.s32.totalorder %s62, 0
      %s64 = scalar_select %p63, %s62, 0
      %s65 = smul.u32 %s28, 4
      %s66 = ssub.s32 %s65, 1
      %p67 = scmp.gt.s32.totalorder %s66, 0
      %s68 = scalar_select %p67, %s66, 0
      %s69 = ssub.s32 %s20, %s32
      %s70 = ssub.s32 %s64, %s68
      %s71 = sor.u32 %s69, %s70
      %p72 = scmp.eq.s32.totalorder %s71, 0
      %s74 = sadd.s32 %s73, 1
      %s75 = scalar_select %p72, %s73, %s74
      %p78 = pneg %p72
      %p79 = scmp.eq.s32.totalorder %s13, 7
      %p80 = por %p78, %p79
      %p81 = scmp.ne.s32.totalorder %s73, %s76
      %p82 = scmp.eq.s32.totalorder %s13, 0
      %p83 = por %p81, %p82
      %p84 = scmp.ne.s32.totalorder %s73, %s76
      %p85 = scmp.eq.s32.totalorder %s18, 7
      %p86 = por %p84, %p85
      %p87 = scmp.ne.s32.totalorder %s76, %s77
      %p88 = scmp.eq.s32.totalorder %s18, 0
      %p89 = por %p87, %p88
      %p90 = scmp.ne.s32.totalorder %s76, %s77
      %p91 = scmp.eq.s32.totalorder %s19, 7
      %p92 = por %p90, %p91
      %p94 = scmp.ne.s32.totalorder %s77, %s93
      %p95 = scmp.eq.s32.totalorder %s19, 0
      %p96 = por %p94, %p95
      %s97 = sadd.s32 %s21, 1
      %s98 = smul.u32 %s97, 4
      %p99 = scmp.lt.s32.totalorder %s98, 15
      %s100 = scalar_select %p99, %s98, 15
      %s101 = sadd.s32 %s28, 1
      %s102 = smul.u32 %s101, 4
      %p103 = scmp.lt.s32.totalorder %s102, 15
      %s104 = scalar_select %p103, %s102, 15
      %s105 = ssub.s32 %s20, %s32
      %s106 = ssub.s32 %s100, %s104
      %s107 = sor.u32 %s105, %s106
      %p108 = scmp.eq.s32.totalorder %s107, 0
      %s110 = sadd.s32 %s109, 1
      %s111 = scalar_select %p108, %s109, %s110
      %p114 = pneg %p108
      %p115 = scmp.eq.s32.totalorder %s13, 7
      %p116 = por %p114, %p115
      %p117 = scmp.ne.s32.totalorder %s109, %s112
      %p118 = scmp.eq.s32.totalorder %s13, 0
      %p119 = por %p117, %p118
      %p120 = scmp.ne.s32.totalorder %s109, %s112
      %p121 = scmp.eq.s32.totalorder %s18, 7
      %p122 = por %p120, %p121
      %p123 = scmp.ne.s32.totalorder %s112, %s113
      %p124 = scmp.eq.s32.totalorder %s18, 0
      %p125 = por %p123, %p124
      %p126 = scmp.ne.s32.totalorder %s112, %s113
      %p127 = scmp.eq.s32.totalorder %s19, 7
      %p128 = por %p126, %p127
      %p130 = scmp.ne.s32.totalorder %s113, %s129
      %p131 = scmp.eq.s32.totalorder %s19, 0
      %p132 = por %p130, %p131
      %s134 = sadd.s32 %s133, 1
      %p137 = scmp.eq.s32.totalorder %s13, 7
      %p138 = scmp.ne.s32.totalorder %s133, %s135
      %p139 = scmp.eq.s32.totalorder %s13, 0
      %p140 = por %p138, %p139
      %p141 = scmp.ne.s32.totalorder %s133, %s135
      %p142 = scmp.eq.s32.totalorder %s18, 7
      %p143 = por %p141, %p142
      %p144 = scmp.ne.s32.totalorder %s135, %s136
      %p145 = scmp.eq.s32.totalorder %s18, 0
      %p146 = por %p144, %p145
      %p147 = scmp.ne.s32.totalorder %s135, %s136
      %p148 = scmp.eq.s32.totalorder %s19, 7
      %p149 = por %p147, %p148
      %p151 = scmp.ne.s32.totalorder %s136, %s150
      %p152 = scmp.eq.s32.totalorder %s19, 0
      %p153 = por %p151, %p152
      %s154 = ssub.s32 %s20, %s32
      %s155 = ssub.s32 %s21, %s28
      %s156 = sor.u32 %s154, %s155
      %p157 = scmp.eq.s32.totalorder %s156, 0
      %s159 = sadd.s32 %s158, 1
      %s160 = scalar_select %p157, %s158, %s159
      %p163 = pneg %p157
      %p164 = scmp.eq.s32.totalorder %s13, 7
      %p165 = por %p163, %p164
      %p166 = scmp.ne.s32.totalorder %s158, %s161
      %p167 = scmp.eq.s32.totalorder %s13, 0
      %p168 = por %p166, %p167
      %p169 = scmp.ne.s32.totalorder %s158, %s161
      %p170 = scmp.eq.s32.totalorder %s18, 7
      %p171 = por %p169, %p170
      %p172 = scmp.ne.s32.totalorder %s161, %s162
      %p173 = scmp.eq.s32.totalorder %s18, 0
      %p174 = por %p172, %p173
      %p175 = scmp.ne.s32.totalorder %s161, %s162
      %p176 = scmp.eq.s32.totalorder %s19, 7
      %p177 = por %p175, %p176
      %p179 = scmp.ne.s32.totalorder %s162, %s178
      %p180 = scmp.eq.s32.totalorder %s19, 0
      %p181 = por %p179, %p180
      %p182 = scmp.le.s32.totalorder 1, %s13
      %p183 = scmp.lt.s32.totalorder %s13, 9
      %p184 = pnand %p182, %p183
      %p185 = pneg %p184
      // Predicated region
      $region9: #{conv_module_forward.1} parent=5 // pred_check
        _
      $region10: #{conv_module_forward.1} parent=5 // pred_check_branch
        %187 = sbr.rel (%p184) target = $region12
      $region11: #{conv_module_forward.1} parent=5 // pred_region
        %s188 = ssub.s32 %s13, 1
        // Predicated region
        $region13: #{conv_module_forward.1} parent=11 // pred_check
          %p189 = pneg %p146
        $region14: #{conv_module_forward.1} parent=11 // pred_check_branch
          %191 = sbr.rel (%p189) target = $region16
        $region15: #{conv_module_forward.1} parent=11 // pred_region
          _
        $region16: #{conv_module_forward.1} parent=11 // pred_fallthru
          _
      $region12: #{conv_module_forward.1} parent=5 // pred_fallthru
        _
      %p192 = scmp.lt.s32.totalorder %s13, 8
      // Predicated region
      $region17: #{conv_module_forward.1} parent=5 // pred_check
        %p193 = pneg %p192
      $region18: #{conv_module_forward.1} parent=5 // pred_check_branch
        %195 = sbr.rel (%p193) target = $region20
      $region19: #{conv_module_forward.1} parent=5 // pred_region
        // Predicated region
        $region21: #{conv_module_forward.1} parent=19 // pred_check
          %p196 = pneg %p47
        $region22: #{conv_module_forward.1} parent=19 // pred_check_branch
          %198 = sbr.rel (%p196) target = $region24
        $region23: #{conv_module_forward.1} parent=19 // pred_region
          %s199 = smul.u32 4, %s21
          %p200 = scmp.lt.s32.totalorder %s20, 1
          %s201 = scalar_select %p200, %s20, 1
          %p202 = scmp.lt.s32.totalorder %s199, 15
          %s203 = scalar_select %p202, %s199, 15
          %s204 = smul.addr %s203, 2
          %s205 = smul.addr %s201, 32
          %s206 = sadd.s32 %s204, %s205
          %s207 = smul.addr %s206, 8
          %s208 = scalar_lea.vmem %s0, %s207
          %s209 = smul.u32 4, %s21
        $region24: #{conv_module_forward.1} parent=19 // pred_fallthru
          _
        // Predicated region
        $region25: #{conv_module_forward.1} parent=19 // pred_check
          %p210 = pneg %p83
        $region26: #{conv_module_forward.1} parent=19 // pred_check_branch
          %212 = sbr.rel (%p210) target = $region28
        $region27: #{conv_module_forward.1} parent=19 // pred_region
          %s213 = smul.u32 %s21, 4
          %s214 = ssub.s32 %s213, 1
          %p215 = scmp.gt.s32.totalorder %s214, 0
          %s216 = scalar_select %p215, %s214, 0
          %p217 = scmp.lt.s32.totalorder %s20, 1
          %s218 = scalar_select %p217, %s20, 1
          %p219 = scmp.lt.s32.totalorder %s216, 15
          %s220 = scalar_select %p219, %s216, 15
          %s221 = smul.addr %s220, 2
          %s222 = smul.addr %s218, 32
          %s223 = sadd.s32 %s221, %s222
          %s224 = smul.addr %s223, 8
          %s225 = scalar_lea.vmem %s1, %s224
          %s226 = smul.u32 %s21, 4
          %s227 = ssub.s32 %s226, 1
          %p228 = scmp.gt.s32.totalorder %s227, 0
          %s229 = scalar_select %p228, %s227, 0
        $region28: #{conv_module_forward.1} parent=19 // pred_fallthru
          _
        // Predicated region
        $region29: #{conv_module_forward.1} parent=19 // pred_check
          %p230 = pneg %p119
        $region30: #{conv_module_forward.1} parent=19 // pred_check_branch
          %232 = sbr.rel (%p230) target = $region32
        $region31: #{conv_module_forward.1} parent=19 // pred_region
          %s233 = sadd.s32 %s21, 1
          %s234 = smul.u32 %s233, 4
          %p235 = scmp.lt.s32.totalorder %s234, 15
          %s236 = scalar_select %p235, %s234, 15
          %p237 = scmp.lt.s32.totalorder %s20, 1
          %s238 = scalar_select %p237, %s20, 1
          %p239 = scmp.lt.s32.totalorder %s236, 15
          %s240 = scalar_select %p239, %s236, 15
          %s241 = smul.addr %s240, 2
          %s242 = smul.addr %s238, 32
          %s243 = sadd.s32 %s241, %s242
          %s244 = smul.addr %s243, 8
          %s245 = scalar_lea.vmem %s2, %s244
          %s246 = sadd.s32 %s21, 1
          %s247 = smul.u32 %s246, 4
          %p248 = scmp.lt.s32.totalorder %s247, 15
          %s249 = scalar_select %p248, %s247, 15
        $region32: #{conv_module_forward.1} parent=19 // pred_fallthru
          _
      $region20: #{conv_module_forward.1} parent=5 // pred_fallthru
        _
      %p250 = scmp.le.s32.totalorder 1, %s13
      %p251 = scmp.lt.s32.totalorder %s13, 9
      %p252 = pnand %p250, %p251
      %p253 = pneg %p252
      // Predicated region
      $region33: #{conv_module_forward.1} parent=5 // pred_check
        _
      $region34: #{conv_module_forward.1} parent=5 // pred_check_branch
        %255 = sbr.rel (%p252) target = $region36
      $region35: #{conv_module_forward.1} parent=5 // pred_region
        %s256 = ssub.s32 %s13, 1
        %s257 = smul.u32 4, %s23
        %p258 = scmp.lt.s32.totalorder %s22, 1
        %s259 = scalar_select %p258, %s22, 1
        %p260 = scmp.lt.s32.totalorder %s257, 15
        %s261 = scalar_select %p260, %s257, 15
        %s262 = smul.addr %s261, 2
        %s263 = smul.addr %s259, 32
        %s264 = sadd.s32 %s262, %s263
        %s265 = smul.addr %s264, 8
        %s266 = scalar_lea.vmem %s0, %s265
        %p267 = pneg %p53
        %p268 = pneg %p50
        %s269 = smul.u32 %s23, 4
        %s270 = ssub.s32 %s269, 1
        %p271 = scmp.gt.s32.totalorder %s270, 0
        %s272 = scalar_select %p271, %s270, 0
        %p273 = scmp.lt.s32.totalorder %s22, 1
        %s274 = scalar_select %p273, %s22, 1
        %p275 = scmp.lt.s32.totalorder %s272, 15
        %s276 = scalar_select %p275, %s272, 15
        %s277 = smul.addr %s276, 2
        %s278 = smul.addr %s274, 32
        %s279 = sadd.s32 %s277, %s278
        %s280 = smul.addr %s279, 8
        %s281 = scalar_lea.vmem %s1, %s280
        %p282 = pneg %p89
        %p283 = pneg %p86
        %s284 = sadd.s32 %s23, 1
        %s285 = smul.u32 %s284, 4
        %p286 = scmp.lt.s32.totalorder %s285, 15
        %s287 = scalar_select %p286, %s285, 15
        %p288 = scmp.lt.s32.totalorder %s22, 1
        %s289 = scalar_select %p288, %s22, 1
        %p290 = scmp.lt.s32.totalorder %s287, 15
        %s291 = scalar_select %p290, %s287, 15
        %s292 = smul.addr %s291, 2
        %s293 = smul.addr %s289, 32
        %s294 = sadd.s32 %s292, %s293
        %s295 = smul.addr %s294, 8
        %s296 = scalar_lea.vmem %s2, %s295
        %p297 = pneg %p125
        %p298 = pneg %p122
        %p299 = pneg %p146
        %p300 = pneg %p143
        %p301 = pneg %p174
        %p302 = pneg %p171
        %s303 = sand.u32 %s161, 1
        %s304 = scalar_lea.sflag [#allocation4], %s303
        %s305 = sand.u32 %s161, 1
        %s306 = smul.addr %s305, 64
        %s307 = scalar_lea.vmem [#allocation3], %s306
        %s308 = smul.u32 4, %s23
        %p309 = scmp.lt.s32.totalorder %s22, 1
        %s310 = scalar_select %p309, %s22, 1
        %p311 = scmp.lt.s32.totalorder %s308, 15
        %s312 = scalar_select %p311, %s308, 15
        %s313 = smul.addr %s312, 2
        %s314 = smul.addr %s310, 32
        %s315 = sadd.s32 %s313, %s314
        %s316 = smul.addr %s315, 8
        %s317 = scalar_lea.vmem %s0, %s316
        %s318 = smul.u32 4, %s23
        %s319 = smul.u32 %s23, 4
        %s320 = ssub.s32 %s319, 1
        %p321 = scmp.gt.s32.totalorder %s320, 0
        %s322 = scalar_select %p321, %s320, 0
        %p323 = scmp.lt.s32.totalorder %s22, 1
        %s324 = scalar_select %p323, %s22, 1
        %p325 = scmp.lt.s32.totalorder %s322, 15
        %s326 = scalar_select %p325, %s322, 15
        %s327 = smul.addr %s326, 2
        %s328 = smul.addr %s324, 32
        %s329 = sadd.s32 %s327, %s328
        %s330 = smul.addr %s329, 8
        %s331 = scalar_lea.vmem %s1, %s330
        %s332 = smul.u32 %s23, 4
        %s333 = ssub.s32 %s332, 1
        %p334 = scmp.gt.s32.totalorder %s333, 0
        %s335 = scalar_select %p334, %s333, 0
        %s336 = sadd.s32 %s23, 1
        %s337 = smul.u32 %s336, 4
        %p338 = scmp.lt.s32.totalorder %s337, 15
        %s339 = scalar_select %p338, %s337, 15
        %p340 = scmp.lt.s32.totalorder %s22, 1
        %s341 = scalar_select %p340, %s22, 1
        %p342 = scmp.lt.s32.totalorder %s339, 15
        %s343 = scalar_select %p342, %s339, 15
        %s344 = smul.addr %s343, 2
        %s345 = smul.addr %s341, 32
        %s346 = sadd.s32 %s344, %s345
        %s347 = smul.addr %s346, 8
        %s348 = scalar_lea.vmem %s2, %s347
        %s349 = sadd.s32 %s23, 1
        %s350 = smul.u32 %s349, 4
        %p351 = scmp.lt.s32.totalorder %s350, 15
        %s352 = scalar_select %p351, %s350, 15
        %s353 = smul.u32 8, %s23
        %354 = vst [vmem:[#allocation2] sm:$0x1] 0.0
        %355 = vst [vmem:[#allocation2 + $0x18] sm:$0x1] 0.0
        %356 = vst [vmem:[#allocation2 + $0x30] sm:$0x1] 0.0
        %357 = vst [vmem:[#allocation2 + $0x48] sm:$0x1] 0.0
        %358 = vst [vmem:[#allocation2 + $0x60] sm:$0x1] 0.0
        %359 = vst [vmem:[#allocation2 + $0x78] sm:$0x1] 0.0
        %360 = vst [vmem:[#allocation2 + $0x11] sm:$0x1] 0.0
        %361 = vst [vmem:[#allocation2 + $0x29] sm:$0x1] 0.0
        %362 = vst [vmem:[#allocation2 + $0x41] sm:$0x1] 0.0
        %363 = vst [vmem:[#allocation2 + $0x59] sm:$0x1] 0.0
        %364 = vst [vmem:[#allocation2 + $0x71] sm:$0x1] 0.0
        %365 = vst [vmem:[#allocation2 + $0x89] sm:$0x1] 0.0
        %p366 = scmp.gt.s32.totalorder %s23, 0
        %v367 = vld [vmem:[%s331] sm:$0xff]
        %v368 = vld [vmem:[%s331 + $0x8] sm:$0xff]
        %s369 = scalar_select %p366, 1, 0
        %v370 = vstv %s369
        %vm371 = vcmp.eq.s32.totalorder %v370, 1
        %v372 = vsel %vm371, %v367, 0.0
        %v373 = vsel %vm371, %v368, 0.0
        %p374 = scmp.lt.s32.totalorder %s23, 3
        %v375 = vld [vmem:[%s348] sm:$0xff]
        %v376 = vld [vmem:[%s348 + $0x8] sm:$0xff]
        %s377 = scalar_select %p374, 1, 0
        %v378 = vstv %s377
        %vm379 = vcmp.eq.s32.totalorder %v378, 1
        %v380 = vsel %vm379, %v375, 0.0
        %v381 = vsel %vm379, %v376, 0.0
        %382 = vst [vmem:[#allocation2 + $0x1] sm:$0xff] %v372
        %383 = vst [vmem:[#allocation2 + $0x9] sm:$0xff] %v373
        %v384 = vld [vmem:[%s317] sm:$0xff]
        %v385 = vld [vmem:[%s317 + $0x8] sm:$0xff]
        %v386 = vld [vmem:[%s317 + $0x10] sm:$0xff]
        %v387 = vld [vmem:[%s317 + $0x18] sm:$0xff]
        %v388 = vld [vmem:[%s317 + $0x20] sm:$0xff]
        %v389 = vld [vmem:[%s317 + $0x28] sm:$0xff]
        %v390 = vld [vmem:[%s317 + $0x30] sm:$0xff]
        %v391 = vld [vmem:[%s317 + $0x38] sm:$0xff]
        %s392 = scalar_lea.vmem [#allocation2], 24
        %393 = vst [vmem:[%s392 + $0x1] sm:$0xff] %v384
        %394 = vst [vmem:[%s392 + $0x9] sm:$0xff] %v385
        %395 = vst [vmem:[%s392 + $0x19] sm:$0xff] %v386
        %396 = vst [vmem:[%s392 + $0x21] sm:$0xff] %v387
        %397 = vst [vmem:[%s392 + $0x31] sm:$0xff] %v388
        %398 = vst [vmem:[%s392 + $0x39] sm:$0xff] %v389
        %399 = vst [vmem:[%s392 + $0x49] sm:$0xff] %v390
        %400 = vst [vmem:[%s392 + $0x51] sm:$0xff] %v391
        %s401 = scalar_lea.vmem [#allocation2], 120
        %402 = vst [vmem:[%s401 + $0x1] sm:$0xff] %v380
        %403 = vst [vmem:[%s401 + $0x9] sm:$0xff] %v381
        %v404 = vld [vmem:[#allocation2] sm:$0xff]
        %v405 = vld [vmem:[#allocation2 + $0x8] sm:$0xff]
        %v406 = vld [vmem:[#allocation2 + $0x18] sm:$0xff]
        %v407 = vld [vmem:[#allocation2 + $0x20] sm:$0xff]
        %v408 = vld [vmem:[#allocation2 + $0x30] sm:$0xff]
        %v409 = vld [vmem:[#allocation2 + $0x38] sm:$0xff]
        %v410 = vld [vmem:[#allocation2 + $0x48] sm:$0xff]
        %v411 = vld [vmem:[#allocation2 + $0x50] sm:$0xff]
        %v412 = vld [vmem:[#allocation2 + $0x1] sm:$0xff]
        %v413 = vld [vmem:[#allocation2 + $0x9] sm:$0xff]
        %v414 = vld [vmem:[#allocation2 + $0x19] sm:$0xff]
        %v415 = vld [vmem:[#allocation2 + $0x21] sm:$0xff]
        %v416 = vld [vmem:[#allocation2 + $0x31] sm:$0xff]
        %v417 = vld [vmem:[#allocation2 + $0x39] sm:$0xff]
        %v418 = vld [vmem:[#allocation2 + $0x49] sm:$0xff]
        %v419 = vld [vmem:[#allocation2 + $0x51] sm:$0xff]
        %v420 = vld [vmem:[#allocation2 + $0x2] sm:$0xff]
        %v421 = vld [vmem:[#allocation2 + $0xa] sm:$0xff]
        %v422 = vld [vmem:[#allocation2 + $0x1a] sm:$0xff]
        %v423 = vld [vmem:[#allocation2 + $0x22] sm:$0xff]
        %v424 = vld [vmem:[#allocation2 + $0x32] sm:$0xff]
        %v425 = vld [vmem:[#allocation2 + $0x3a] sm:$0xff]
        %v426 = vld [vmem:[#allocation2 + $0x4a] sm:$0xff]
        %v427 = vld [vmem:[#allocation2 + $0x52] sm:$0xff]
        %v428 = vld [vmem:[%s3] sm:$0xff]
        %v429 = vld [vmem:[%s3 + $0x8] sm:$0xff]
        %v430 = vld [vmem:[%s3 + $0x10] sm:$0xff]
        %v431 = vld [vmem:[%s3 + $0x18] sm:$0xff]
        %v432 = vld [vmem:[%s3 + $0x20] sm:$0xff]
        %v433 = vld [vmem:[%s3 + $0x28] sm:$0xff]
        %v434 = vld [vmem:[%s3 + $0x30] sm:$0xff]
        %v435 = vld [vmem:[%s3 + $0x38] sm:$0xff]
        %v436 = vld [vmem:[%s3 + $0x40] sm:$0xff]
        %v437 = vld [vmem:[%s3 + $0x48] sm:$0xff]
        %v438 = vld [vmem:[%s3 + $0x50] sm:$0xff]
        %v439 = vld [vmem:[%s3 + $0x58] sm:$0xff]
        %v440 = vld [vmem:[%s3 + $0x60] sm:$0xff]
        %v441 = vld [vmem:[%s3 + $0x68] sm:$0xff]
        %v442 = vld [vmem:[%s3 + $0x70] sm:$0xff]
        %v443 = vld [vmem:[%s3 + $0x78] sm:$0xff]
        %v444 = vld [vmem:[%s3 + $0x80] sm:$0xff]
        %v445 = vld [vmem:[%s3 + $0x88] sm:$0xff]
        %v446 = vld [vmem:[%s3 + $0x90] sm:$0xff]
        %v447 = vld [vmem:[%s3 + $0x98] sm:$0xff]
        %v448 = vld [vmem:[%s3 + $0xa0] sm:$0xff]
        %v449 = vld [vmem:[%s3 + $0xa8] sm:$0xff]
        %v450 = vld [vmem:[%s3 + $0xb0] sm:$0xff]
        %v451 = vld [vmem:[%s3 + $0xb8] sm:$0xff]
        %v452 = vld [vmem:[%s3 + $0xc0] sm:$0xff]
        %v453 = vld [vmem:[%s3 + $0xc8] sm:$0xff]
        %v454 = vld [vmem:[%s3 + $0xd0] sm:$0xff]
        %v455 = vld [vmem:[%s3 + $0xd8] sm:$0xff]
        %v456 = vld [vmem:[%s3 + $0xe0] sm:$0xff]
        %v457 = vld [vmem:[%s3 + $0xe8] sm:$0xff]
        %v458 = vld [vmem:[%s3 + $0xf0] sm:$0xff]
        %v459 = vld [vmem:[%s3 + $0xf8] sm:$0xff]
        %v460 = vld [vmem:[%s3 + $0x100] sm:$0xff]
        %v461 = vld [vmem:[%s3 + $0x108] sm:$0xff]
        %v462 = vld [vmem:[%s3 + $0x110] sm:$0xff]
        %v463 = vld [vmem:[%s3 + $0x118] sm:$0xff]
        %v464 = vld [vmem:[%s3 + $0x120] sm:$0xff]
        %v465 = vld [vmem:[%s3 + $0x128] sm:$0xff]
        %v466 = vld [vmem:[%s3 + $0x130] sm:$0xff]
        %v467 = vld [vmem:[%s3 + $0x138] sm:$0xff]
        %v468 = vld [vmem:[%s3 + $0x140] sm:$0xff]
        %v469 = vld [vmem:[%s3 + $0x148] sm:$0xff]
        %v470 = vld [vmem:[%s3 + $0x150] sm:$0xff]
        %v471 = vld [vmem:[%s3 + $0x158] sm:$0xff]
        %v472 = vld [vmem:[%s3 + $0x160] sm:$0xff]
        %v473 = vld [vmem:[%s3 + $0x168] sm:$0xff]
        %v474 = vld [vmem:[%s3 + $0x170] sm:$0xff]
        %v475 = vld [vmem:[%s3 + $0x178] sm:$0xff]
        %v476 = vld [vmem:[%s392] sm:$0xff]
        %v477 = vld [vmem:[%s392 + $0x8] sm:$0xff]
        %v478 = vld [vmem:[%s392 + $0x18] sm:$0xff]
        %v479 = vld [vmem:[%s392 + $0x20] sm:$0xff]
        %v480 = vld [vmem:[%s392 + $0x30] sm:$0xff]
        %v481 = vld [vmem:[%s392 + $0x38] sm:$0xff]
        %v482 = vld [vmem:[%s392 + $0x48] sm:$0xff]
        %v483 = vld [vmem:[%s392 + $0x50] sm:$0xff]
        %v484 = vld [vmem:[%s392 + $0x1] sm:$0xff]
        %v485 = vld [vmem:[%s392 + $0x9] sm:$0xff]
        %v486 = vld [vmem:[%s392 + $0x19] sm:$0xff]
        %v487 = vld [vmem:[%s392 + $0x21] sm:$0xff]
        %v488 = vld [vmem:[%s392 + $0x31] sm:$0xff]
        %v489 = vld [vmem:[%s392 + $0x39] sm:$0xff]
        %v490 = vld [vmem:[%s392 + $0x49] sm:$0xff]
        %v491 = vld [vmem:[%s392 + $0x51] sm:$0xff]
        %v492 = vld [vmem:[%s392 + $0x2] sm:$0xff]
        %v493 = vld [vmem:[%s392 + $0xa] sm:$0xff]
        %v494 = vld [vmem:[%s392 + $0x1a] sm:$0xff]
        %v495 = vld [vmem:[%s392 + $0x22] sm:$0xff]
        %v496 = vld [vmem:[%s392 + $0x32] sm:$0xff]
        %v497 = vld [vmem:[%s392 + $0x3a] sm:$0xff]
        %v498 = vld [vmem:[%s392 + $0x4a] sm:$0xff]
        %v499 = vld [vmem:[%s392 + $0x52] sm:$0xff]
        %s500 = scalar_lea.vmem %s3, 384
        %v501 = vld [vmem:[%s500] sm:$0xff]
        %v502 = vld [vmem:[%s500 + $0x8] sm:$0xff]
        %v503 = vld [vmem:[%s500 + $0x10] sm:$0xff]
        %v504 = vld [vmem:[%s500 + $0x18] sm:$0xff]
        %v505 = vld [vmem:[%s500 + $0x20] sm:$0xff]
        %v506 = vld [vmem:[%s500 + $0x28] sm:$0xff]
        %v507 = vld [vmem:[%s500 + $0x30] sm:$0xff]
        %v508 = vld [vmem:[%s500 + $0x38] sm:$0xff]
        %v509 = vld [vmem:[%s500 + $0x40] sm:$0xff]
        %v510 = vld [vmem:[%s500 + $0x48] sm:$0xff]
        %v511 = vld [vmem:[%s500 + $0x50] sm:$0xff]
        %v512 = vld [vmem:[%s500 + $0x58] sm:$0xff]
        %v513 = vld [vmem:[%s500 + $0x60] sm:$0xff]
        %v514 = vld [vmem:[%s500 + $0x68] sm:$0xff]
        %v515 = vld [vmem:[%s500 + $0x70] sm:$0xff]
        %v516 = vld [vmem:[%s500 + $0x78] sm:$0xff]
        %v517 = vld [vmem:[%s500 + $0x80] sm:$0xff]
        %v518 = vld [vmem:[%s500 + $0x88] sm:$0xff]
        %v519 = vld [vmem:[%s500 + $0x90] sm:$0xff]
        %v520 = vld [vmem:[%s500 + $0x98] sm:$0xff]
        %v521 = vld [vmem:[%s500 + $0xa0] sm:$0xff]
        %v522 = vld [vmem:[%s500 + $0xa8] sm:$0xff]
        %v523 = vld [vmem:[%s500 + $0xb0] sm:$0xff]
        %v524 = vld [vmem:[%s500 + $0xb8] sm:$0xff]
        %v525 = vld [vmem:[%s500 + $0xc0] sm:$0xff]
        %v526 = vld [vmem:[%s500 + $0xc8] sm:$0xff]
        %v527 = vld [vmem:[%s500 + $0xd0] sm:$0xff]
        %v528 = vld [vmem:[%s500 + $0xd8] sm:$0xff]
        %v529 = vld [vmem:[%s500 + $0xe0] sm:$0xff]
        %v530 = vld [vmem:[%s500 + $0xe8] sm:$0xff]
        %v531 = vld [vmem:[%s500 + $0xf0] sm:$0xff]
        %v532 = vld [vmem:[%s500 + $0xf8] sm:$0xff]
        %v533 = vld [vmem:[%s500 + $0x100] sm:$0xff]
        %v534 = vld [vmem:[%s500 + $0x108] sm:$0xff]
        %v535 = vld [vmem:[%s500 + $0x110] sm:$0xff]
        %v536 = vld [vmem:[%s500 + $0x118] sm:$0xff]
        %v537 = vld [vmem:[%s500 + $0x120] sm:$0xff]
        %v538 = vld [vmem:[%s500 + $0x128] sm:$0xff]
        %v539 = vld [vmem:[%s500 + $0x130] sm:$0xff]
        %v540 = vld [vmem:[%s500 + $0x138] sm:$0xff]
        %v541 = vld [vmem:[%s500 + $0x140] sm:$0xff]
        %v542 = vld [vmem:[%s500 + $0x148] sm:$0xff]
        %v543 = vld [vmem:[%s500 + $0x150] sm:$0xff]
        %v544 = vld [vmem:[%s500 + $0x158] sm:$0xff]
        %v545 = vld [vmem:[%s500 + $0x160] sm:$0xff]
        %v546 = vld [vmem:[%s500 + $0x168] sm:$0xff]
        %v547 = vld [vmem:[%s500 + $0x170] sm:$0xff]
        %v548 = vld [vmem:[%s500 + $0x178] sm:$0xff]
        %549 = vmatprep.subr.mxu0 0.0
        %550 = vmatpush1.msra.mxu0 %v516
        %551 = vmatprep.subr.mxu0 0.0
        %552 = vmatpush1.msra.mxu0 %v515
        %553 = vmatprep.subr.mxu0 0.0
        %554 = vmatpush1.msra.mxu0 %v514
        %555 = vmatprep.subr.mxu0 0.0
        %556 = vmatpush1.msra.mxu0 %v513
        %557 = vmatprep.subr.mxu0 0.0
        %558 = vmatpush1.msra.mxu0 %v512
        %559 = vmatprep.subr.mxu0 0.0
        %560 = vmatpush1.msra.mxu0 %v511
        %561 = vmatprep.subr.mxu0 0.0
        %562 = vmatpush1.msra.mxu0 %v510
        %563 = vmatprep.subr.mxu0 0.0
        %564 = vmatpush1.msra.mxu0 %v509
        %565 = vmatprep.subr.mxu0 0.0
        %566 = vmatpush1.msra.mxu0 %v508
        %567 = vmatprep.subr.mxu0 0.0
        %568 = vmatpush1.msra.mxu0 %v507
        %569 = vmatprep.subr.mxu0 0.0
        %570 = vmatpush1.msra.mxu0 %v506
        %571 = vmatprep.subr.mxu0 0.0
        %572 = vmatpush1.msra.mxu0 %v505
        %573 = vmatprep.subr.mxu0 0.0
        %574 = vmatpush1.msra.mxu0 %v504
        %575 = vmatprep.subr.mxu0 0.0
        %576 = vmatpush1.msra.mxu0 %v503
        %577 = vmatprep.subr.mxu0 0.0
        %578 = vmatpush1.msra.mxu0 %v502
        %579 = vmatprep.subr.mxu0 0.0
        %580 = vmatpush1.msra.mxu0 %v501
        %581 = vmatprep.subr.mxu0 0.0
        %582 = vmatpush2.msra.mxu0 %v532
        %583 = vmatprep.subr.mxu0 0.0
        %584 = vmatpush2.msra.mxu0 %v531
        %585 = vmatprep.subr.mxu0 0.0
        %586 = vmatpush2.msra.mxu0 %v530
        %587 = vmatprep.subr.mxu0 0.0
        %588 = vmatpush2.msra.mxu0 %v529
        %589 = vmatprep.subr.mxu0 0.0
        %590 = vmatpush2.msra.mxu0 %v528
        %591 = vmatprep.subr.mxu0 0.0
        %592 = vmatpush2.msra.mxu0 %v527
        %593 = vmatprep.subr.mxu0 0.0
        %594 = vmatpush2.msra.mxu0 %v526
        %595 = vmatprep.subr.mxu0 0.0
        %596 = vmatpush2.msra.mxu0 %v525
        %597 = vmatprep.subr.mxu0 0.0
        %598 = vmatpush2.msra.mxu0 %v524
        %599 = vmatprep.subr.mxu0 0.0
        %600 = vmatpush2.msra.mxu0 %v523
        %601 = vmatprep.subr.mxu0 0.0
        %602 = vmatpush2.msra.mxu0 %v522
        %603 = vmatprep.subr.mxu0 0.0
        %604 = vmatpush2.msra.mxu0 %v521
        %605 = vmatprep.subr.mxu0 0.0
        %606 = vmatpush2.msra.mxu0 %v520
        %607 = vmatprep.subr.mxu0 0.0
        %608 = vmatpush2.msra.mxu0 %v519
        %609 = vmatprep.subr.mxu0 0.0
        %610 = vmatpush2.msra.mxu0 %v518
        %611 = vmatprep.subr.mxu0 0.0
        %612 = vmatpush2.msra.mxu0 %v517
        %613 = vmatprep.mubr.f32.mxu0 %v484
        %614 = vmatmul.mubr.f32.gmra.mxu0 %v476
        %v615 = vpop.f32.mrf.mxu0
        %v616 = vadd.f32 0.0, %v615
        %v617 = vpop.f32.mrf.mxu0
        %618 = vmatprep.mubr.f32.mxu0 %v485
        %619 = vmatmul.mubr.f32.gmra.mxu0 %v477
        %v620 = vpop.f32.mrf.mxu0
        %v621 = vadd.f32 0.0, %v620
        %v622 = vpop.f32.mrf.mxu0
        %623 = vmatprep.mubr.f32.mxu0 %v486
        %624 = vmatmul.mubr.f32.gmra.mxu0 %v478
        %v625 = vpop.f32.mrf.mxu0
        %v626 = vadd.f32 0.0, %v625
        %v627 = vpop.f32.mrf.mxu0
        %628 = vmatprep.mubr.f32.mxu0 %v487
        %629 = vmatmul.mubr.f32.gmra.mxu0 %v479
        %v630 = vpop.f32.mrf.mxu0
        %v631 = vadd.f32 0.0, %v630
        %v632 = vpop.f32.mrf.mxu0
        %633 = vmatprep.mubr.f32.mxu0 %v488
        %634 = vmatmul.mubr.f32.gmra.mxu0 %v480
        %v635 = vpop.f32.mrf.mxu0
        %v636 = vadd.f32 0.0, %v635
        %v637 = vpop.f32.mrf.mxu0
        %638 = vmatprep.mubr.f32.mxu0 %v489
        %639 = vmatmul.mubr.f32.gmra.mxu0 %v481
        %v640 = vpop.f32.mrf.mxu0
        %v641 = vadd.f32 0.0, %v640
        %v642 = vpop.f32.mrf.mxu0
        %643 = vmatprep.mubr.f32.mxu0 %v490
        %644 = vmatmul.mubr.f32.gmra.mxu0 %v482
        %v645 = vpop.f32.mrf.mxu0
        %v646 = vadd.f32 0.0, %v645
        %v647 = vpop.f32.mrf.mxu0
        %648 = vmatprep.mubr.f32.mxu0 %v491
        %649 = vmatmul.mubr.f32.gmra.mxu0 %v483
        %v650 = vpop.f32.mrf.mxu0
        %v651 = vadd.f32 0.0, %v650
        %v652 = vpop.f32.mrf.mxu0
        %653 = vdwg.mxu0
        %654 = vmatprep.subr.mxu0 0.0
        %655 = vmatpush1.msra.mxu0 %v548
        %656 = vmatprep.subr.mxu0 0.0
        %657 = vmatpush1.msra.mxu0 %v547
        %658 = vmatprep.subr.mxu0 0.0
        %659 = vmatpush1.msra.mxu0 %v546
        %660 = vmatprep.subr.mxu0 0.0
        %661 = vmatpush1.msra.mxu0 %v545
        %662 = vmatprep.subr.mxu0 0.0
        %663 = vmatpush1.msra.mxu0 %v544
        %664 = vmatprep.subr.mxu0 0.0
        %665 = vmatpush1.msra.mxu0 %v543
        %666 = vmatprep.subr.mxu0 0.0
        %667 = vmatpush1.msra.mxu0 %v542
        %668 = vmatprep.subr.mxu0 0.0
        %669 = vmatpush1.msra.mxu0 %v541
        %670 = vmatprep.subr.mxu0 0.0
        %671 = vmatpush1.msra.mxu0 %v540
        %672 = vmatprep.subr.mxu0 0.0
        %673 = vmatpush1.msra.mxu0 %v539
        %674 = vmatprep.subr.mxu0 0.0
        %675 = vmatpush1.msra.mxu0 %v538
        %676 = vmatprep.subr.mxu0 0.0
        %677 = vmatpush1.msra.mxu0 %v537
        %678 = vmatprep.subr.mxu0 0.0
        %679 = vmatpush1.msra.mxu0 %v536
        %680 = vmatprep.subr.mxu0 0.0
        %681 = vmatpush1.msra.mxu0 %v535
        %682 = vmatprep.subr.mxu0 0.0
        %683 = vmatpush1.msra.mxu0 %v534
        %684 = vmatprep.subr.mxu0 0.0
        %685 = vmatpush1.msra.mxu0 %v533
        %686 = vmatprep.subr.mxu0 0.0
        %687 = vmatpush2.msra.mxu0 0.0
        %688 = vmatprep.subr.mxu0 0.0
        %689 = vmatpush2.msra.mxu0 0.0
        %690 = vmatprep.subr.mxu0 0.0
        %691 = vmatpush2.msra.mxu0 0.0
        %692 = vmatprep.subr.mxu0 0.0
        %693 = vmatpush2.msra.mxu0 0.0
        %694 = vmatprep.subr.mxu0 0.0
        %695 = vmatpush2.msra.mxu0 0.0
        %696 = vmatprep.subr.mxu0 0.0
        %697 = vmatpush2.msra.mxu0 0.0
        %698 = vmatprep.subr.mxu0 0.0
        %699 = vmatpush2.msra.mxu0 0.0
        %700 = vmatprep.subr.mxu0 0.0
        %701 = vmatpush2.msra.mxu0 0.0
        %702 = vmatprep.subr.mxu0 0.0
        %703 = vmatpush2.msra.mxu0 0.0
        %704 = vmatprep.subr.mxu0 0.0
        %705 = vmatpush2.msra.mxu0 0.0
        %706 = vmatprep.subr.mxu0 0.0
        %707 = vmatpush2.msra.mxu0 0.0
        %708 = vmatprep.subr.mxu0 0.0
        %709 = vmatpush2.msra.mxu0 0.0
        %710 = vmatprep.subr.mxu0 0.0
        %711 = vmatpush2.msra.mxu0 0.0
        %712 = vmatprep.subr.mxu0 0.0
        %713 = vmatpush2.msra.mxu0 0.0
        %714 = vmatprep.subr.mxu0 0.0
        %715 = vmatpush2.msra.mxu0 0.0
        %716 = vmatprep.subr.mxu0 0.0
        %717 = vmatpush2.msra.mxu0 0.0
        %718 = vmatprep.mubr.f32.mxu0 0.0
        %719 = vmatmul.mubr.f32.gmra.mxu0 %v492
        %v720 = vpop.f32.mrf.mxu0
        %v721 = vadd.f32 %v616, %v720
        %v722 = vpop.f32.mrf.mxu0
        %723 = vmatprep.mubr.f32.mxu0 0.0
        %724 = vmatmul.mubr.f32.gmra.mxu0 %v493
        %v725 = vpop.f32.mrf.mxu0
        %v726 = vadd.f32 %v621, %v725
        %v727 = vpop.f32.mrf.mxu0
        %728 = vmatprep.mubr.f32.mxu0 0.0
        %729 = vmatmul.mubr.f32.gmra.mxu0 %v494
        %v730 = vpop.f32.mrf.mxu0
        %v731 = vadd.f32 %v626, %v730
        %v732 = vpop.f32.mrf.mxu0
        %733 = vmatprep.mubr.f32.mxu0 0.0
        %734 = vmatmul.mubr.f32.gmra.mxu0 %v495
        %v735 = vpop.f32.mrf.mxu0
        %v736 = vadd.f32 %v631, %v735
        %v737 = vpop.f32.mrf.mxu0
        %738 = vmatprep.mubr.f32.mxu0 0.0
        %739 = vmatmul.mubr.f32.gmra.mxu0 %v496
        %v740 = vpop.f32.mrf.mxu0
        %v741 = vadd.f32 %v636, %v740
        %v742 = vpop.f32.mrf.mxu0
        %743 = vmatprep.mubr.f32.mxu0 0.0
        %744 = vmatmul.mubr.f32.gmra.mxu0 %v497
        %v745 = vpop.f32.mrf.mxu0
        %v746 = vadd.f32 %v641, %v745
        %v747 = vpop.f32.mrf.mxu0
        %748 = vmatprep.mubr.f32.mxu0 0.0
        %749 = vmatmul.mubr.f32.gmra.mxu0 %v498
        %v750 = vpop.f32.mrf.mxu0
        %v751 = vadd.f32 %v646, %v750
        %v752 = vpop.f32.mrf.mxu0
        %753 = vmatprep.mubr.f32.mxu0 0.0
        %754 = vmatmul.mubr.f32.gmra.mxu0 %v499
        %v755 = vpop.f32.mrf.mxu0
        %v756 = vadd.f32 %v651, %v755
        %v757 = vpop.f32.mrf.mxu0
        %758 = vdwg.mxu0
        %759 = vmatprep.subr.mxu0 0.0
        %760 = vmatpush1.msra.mxu0 %v443
        %761 = vmatprep.subr.mxu0 0.0
        %762 = vmatpush1.msra.mxu0 %v442
        %763 = vmatprep.subr.mxu0 0.0
        %764 = vmatpush1.msra.mxu0 %v441
        %765 = vmatprep.subr.mxu0 0.0
        %766 = vmatpush1.msra.mxu0 %v440
        %767 = vmatprep.subr.mxu0 0.0
        %768 = vmatpush1.msra.mxu0 %v439
        %769 = vmatprep.subr.mxu0 0.0
        %770 = vmatpush1.msra.mxu0 %v438
        %771 = vmatprep.subr.mxu0 0.0
        %772 = vmatpush1.msra.mxu0 %v437
        %773 = vmatprep.subr.mxu0 0.0
        %774 = vmatpush1.msra.mxu0 %v436
        %775 = vmatprep.subr.mxu0 0.0
        %776 = vmatpush1.msra.mxu0 %v435
        %777 = vmatprep.subr.mxu0 0.0
        %778 = vmatpush1.msra.mxu0 %v434
        %779 = vmatprep.subr.mxu0 0.0
        %780 = vmatpush1.msra.mxu0 %v433
        %781 = vmatprep.subr.mxu0 0.0
        %782 = vmatpush1.msra.mxu0 %v432
        %783 = vmatprep.subr.mxu0 0.0
        %784 = vmatpush1.msra.mxu0 %v431
        %785 = vmatprep.subr.mxu0 0.0
        %786 = vmatpush1.msra.mxu0 %v430
        %787 = vmatprep.subr.mxu0 0.0
        %788 = vmatpush1.msra.mxu0 %v429
        %789 = vmatprep.subr.mxu0 0.0
        %790 = vmatpush1.msra.mxu0 %v428
        %791 = vmatprep.subr.mxu0 0.0
        %792 = vmatpush2.msra.mxu0 %v459
        %793 = vmatprep.subr.mxu0 0.0
        %794 = vmatpush2.msra.mxu0 %v458
        %795 = vmatprep.subr.mxu0 0.0
        %796 = vmatpush2.msra.mxu0 %v457
        %797 = vmatprep.subr.mxu0 0.0
        %798 = vmatpush2.msra.mxu0 %v456
        %799 = vmatprep.subr.mxu0 0.0
        %800 = vmatpush2.msra.mxu0 %v455
        %801 = vmatprep.subr.mxu0 0.0
        %802 = vmatpush2.msra.mxu0 %v454
        %803 = vmatprep.subr.mxu0 0.0
        %804 = vmatpush2.msra.mxu0 %v453
        %805 = vmatprep.subr.mxu0 0.0
        %806 = vmatpush2.msra.mxu0 %v452
        %807 = vmatprep.subr.mxu0 0.0
        %808 = vmatpush2.msra.mxu0 %v451
        %809 = vmatprep.subr.mxu0 0.0
        %810 = vmatpush2.msra.mxu0 %v450
        %811 = vmatprep.subr.mxu0 0.0
        %812 = vmatpush2.msra.mxu0 %v449
        %813 = vmatprep.subr.mxu0 0.0
        %814 = vmatpush2.msra.mxu0 %v448
        %815 = vmatprep.subr.mxu0 0.0
        %816 = vmatpush2.msra.mxu0 %v447
        %817 = vmatprep.subr.mxu0 0.0
        %818 = vmatpush2.msra.mxu0 %v446
        %819 = vmatprep.subr.mxu0 0.0
        %820 = vmatpush2.msra.mxu0 %v445
        %821 = vmatprep.subr.mxu0 0.0
        %822 = vmatpush2.msra.mxu0 %v444
        %823 = vmatprep.mubr.f32.mxu0 %v412
        %824 = vmatmul.mubr.f32.gmra.mxu0 %v404
        %v825 = vpop.f32.mrf.mxu0
        %v826 = vadd.f32 %v721, %v825
        %v827 = vpop.f32.mrf.mxu0
        %828 = vmatprep.mubr.f32.mxu0 %v413
        %829 = vmatmul.mubr.f32.gmra.mxu0 %v405
        %v830 = vpop.f32.mrf.mxu0
        %v831 = vadd.f32 %v726, %v830
        %v832 = vpop.f32.mrf.mxu0
        %833 = vmatprep.mubr.f32.mxu0 %v414
        %834 = vmatmul.mubr.f32.gmra.mxu0 %v406
        %v835 = vpop.f32.mrf.mxu0
        %v836 = vadd.f32 %v731, %v835
        %v837 = vpop.f32.mrf.mxu0
        %838 = vmatprep.mubr.f32.mxu0 %v415
        %839 = vmatmul.mubr.f32.gmra.mxu0 %v407
        %v840 = vpop.f32.mrf.mxu0
        %v841 = vadd.f32 %v736, %v840
        %v842 = vpop.f32.mrf.mxu0
        %843 = vmatprep.mubr.f32.mxu0 %v416
        %844 = vmatmul.mubr.f32.gmra.mxu0 %v408
        %v845 = vpop.f32.mrf.mxu0
        %v846 = vadd.f32 %v741, %v845
        %v847 = vpop.f32.mrf.mxu0
        %848 = vmatprep.mubr.f32.mxu0 %v417
        %849 = vmatmul.mubr.f32.gmra.mxu0 %v409
        %v850 = vpop.f32.mrf.mxu0
        %v851 = vadd.f32 %v746, %v850
        %v852 = vpop.f32.mrf.mxu0
        %853 = vmatprep.mubr.f32.mxu0 %v418
        %854 = vmatmul.mubr.f32.gmra.mxu0 %v410
        %v855 = vpop.f32.mrf.mxu0
        %v856 = vadd.f32 %v751, %v855
        %v857 = vpop.f32.mrf.mxu0
        %858 = vmatprep.mubr.f32.mxu0 %v419
        %859 = vmatmul.mubr.f32.gmra.mxu0 %v411
        %v860 = vpop.f32.mrf.mxu0
        %v861 = vadd.f32 %v756, %v860
        %v862 = vpop.f32.mrf.mxu0
        %863 = vdwg.mxu0
        %864 = vmatprep.subr.mxu0 0.0
        %865 = vmatpush1.msra.mxu0 %v475
        %866 = vmatprep.subr.mxu0 0.0
        %867 = vmatpush1.msra.mxu0 %v474
        %868 = vmatprep.subr.mxu0 0.0
        %869 = vmatpush1.msra.mxu0 %v473
        %870 = vmatprep.subr.mxu0 0.0
        %871 = vmatpush1.msra.mxu0 %v472
        %872 = vmatprep.subr.mxu0 0.0
        %873 = vmatpush1.msra.mxu0 %v471
        %874 = vmatprep.subr.mxu0 0.0
        %875 = vmatpush1.msra.mxu0 %v470
        %876 = vmatprep.subr.mxu0 0.0
        %877 = vmatpush1.msra.mxu0 %v469
        %878 = vmatprep.subr.mxu0 0.0
        %879 = vmatpush1.msra.mxu0 %v468
        %880 = vmatprep.subr.mxu0 0.0
        %881 = vmatpush1.msra.mxu0 %v467
        %882 = vmatprep.subr.mxu0 0.0
        %883 = vmatpush1.msra.mxu0 %v466
        %884 = vmatprep.subr.mxu0 0.0
        %885 = vmatpush1.msra.mxu0 %v465
        %886 = vmatprep.subr.mxu0 0.0
        %887 = vmatpush1.msra.mxu0 %v464
        %888 = vmatprep.subr.mxu0 0.0
        %889 = vmatpush1.msra.mxu0 %v463
        %890 = vmatprep.subr.mxu0 0.0
        %891 = vmatpush1.msra.mxu0 %v462
        %892 = vmatprep.subr.mxu0 0.0
        %893 = vmatpush1.msra.mxu0 %v461
        %894 = vmatprep.subr.mxu0 0.0
        %895 = vmatpush1.msra.mxu0 %v460
        %896 = vmatprep.subr.mxu0 0.0
        %897 = vmatpush2.msra.mxu0 0.0
        %898 = vmatprep.subr.mxu0 0.0
        %899 = vmatpush2.msra.mxu0 0.0
        %900 = vmatprep.subr.mxu0 0.0
        %901 = vmatpush2.msra.mxu0 0.0
        %902 = vmatprep.subr.mxu0 0.0
        %903 = vmatpush2.msra.mxu0 0.0
        %904 = vmatprep.subr.mxu0 0.0
        %905 = vmatpush2.msra.mxu0 0.0
        %906 = vmatprep.subr.mxu0 0.0
        %907 = vmatpush2.msra.mxu0 0.0
        %908 = vmatprep.subr.mxu0 0.0
        %909 = vmatpush2.msra.mxu0 0.0
        %910 = vmatprep.subr.mxu0 0.0
        %911 = vmatpush2.msra.mxu0 0.0
        %912 = vmatprep.subr.mxu0 0.0
        %913 = vmatpush2.msra.mxu0 0.0
        %914 = vmatprep.subr.mxu0 0.0
        %915 = vmatpush2.msra.mxu0 0.0
        %916 = vmatprep.subr.mxu0 0.0
        %917 = vmatpush2.msra.mxu0 0.0
        %918 = vmatprep.subr.mxu0 0.0
        %919 = vmatpush2.msra.mxu0 0.0
        %920 = vmatprep.subr.mxu0 0.0
        %921 = vmatpush2.msra.mxu0 0.0
        %922 = vmatprep.subr.mxu0 0.0
        %923 = vmatpush2.msra.mxu0 0.0
        %924 = vmatprep.subr.mxu0 0.0
        %925 = vmatpush2.msra.mxu0 0.0
        %926 = vmatprep.subr.mxu0 0.0
        %927 = vmatpush2.msra.mxu0 0.0
        %928 = vmatprep.mubr.f32.mxu0 0.0
        %929 = vmatmul.mubr.f32.gmra.mxu0 %v420
        %v930 = vpop.f32.mrf.mxu0
        %v931 = vadd.f32 %v826, %v930
        %v932 = vpop.f32.mrf.mxu0
        %933 = vmatprep.mubr.f32.mxu0 0.0
        %934 = vmatmul.mubr.f32.gmra.mxu0 %v421
        %v935 = vpop.f32.mrf.mxu0
        %v936 = vadd.f32 %v831, %v935
        %v937 = vpop.f32.mrf.mxu0
        %938 = vmatprep.mubr.f32.mxu0 0.0
        %939 = vmatmul.mubr.f32.gmra.mxu0 %v422
        %v940 = vpop.f32.mrf.mxu0
        %v941 = vadd.f32 %v836, %v940
        %v942 = vpop.f32.mrf.mxu0
        %943 = vmatprep.mubr.f32.mxu0 0.0
        %944 = vmatmul.mubr.f32.gmra.mxu0 %v423
        %v945 = vpop.f32.mrf.mxu0
        %v946 = vadd.f32 %v841, %v945
        %v947 = vpop.f32.mrf.mxu0
        %948 = vmatprep.mubr.f32.mxu0 0.0
        %949 = vmatmul.mubr.f32.gmra.mxu0 %v424
        %v950 = vpop.f32.mrf.mxu0
        %v951 = vadd.f32 %v846, %v950
        %v952 = vpop.f32.mrf.mxu0
        %953 = vmatprep.mubr.f32.mxu0 0.0
        %954 = vmatmul.mubr.f32.gmra.mxu0 %v425
        %v955 = vpop.f32.mrf.mxu0
        %v956 = vadd.f32 %v851, %v955
        %v957 = vpop.f32.mrf.mxu0
        %958 = vmatprep.mubr.f32.mxu0 0.0
        %959 = vmatmul.mubr.f32.gmra.mxu0 %v426
        %v960 = vpop.f32.mrf.mxu0
        %v961 = vadd.f32 %v856, %v960
        %v962 = vpop.f32.mrf.mxu0
        %963 = vmatprep.mubr.f32.mxu0 0.0
        %964 = vmatmul.mubr.f32.gmra.mxu0 %v427
        %v965 = vpop.f32.mrf.mxu0
        %v966 = vadd.f32 %v861, %v965
        %v967 = vpop.f32.mrf.mxu0
        %968 = vdwg.mxu0
        %s969 = scalar_lea.vmem [#allocation2], 48
        %v970 = vld [vmem:[%s969] sm:$0xff]
        %v971 = vld [vmem:[%s969 + $0x8] sm:$0xff]
        %v972 = vld [vmem:[%s969 + $0x18] sm:$0xff]
        %v973 = vld [vmem:[%s969 + $0x20] sm:$0xff]
        %v974 = vld [vmem:[%s969 + $0x30] sm:$0xff]
        %v975 = vld [vmem:[%s969 + $0x38] sm:$0xff]
        %v976 = vld [vmem:[%s969 + $0x48] sm:$0xff]
        %v977 = vld [vmem:[%s969 + $0x50] sm:$0xff]
        %v978 = vld [vmem:[%s969 + $0x1] sm:$0xff]
        %v979 = vld [vmem:[%s969 + $0x9] sm:$0xff]
        %v980 = vld [vmem:[%s969 + $0x19] sm:$0xff]
        %v981 = vld [vmem:[%s969 + $0x21] sm:$0xff]
        %v982 = vld [vmem:[%s969 + $0x31] sm:$0xff]
        %v983 = vld [vmem:[%s969 + $0x39] sm:$0xff]
        %v984 = vld [vmem:[%s969 + $0x49] sm:$0xff]
        %v985 = vld [vmem:[%s969 + $0x51] sm:$0xff]
        %v986 = vld [vmem:[%s969 + $0x2] sm:$0xff]
        %v987 = vld [vmem:[%s969 + $0xa] sm:$0xff]
        %v988 = vld [vmem:[%s969 + $0x1a] sm:$0xff]
        %v989 = vld [vmem:[%s969 + $0x22] sm:$0xff]
        %v990 = vld [vmem:[%s969 + $0x32] sm:$0xff]
        %v991 = vld [vmem:[%s969 + $0x3a] sm:$0xff]
        %v992 = vld [vmem:[%s969 + $0x4a] sm:$0xff]
        %v993 = vld [vmem:[%s969 + $0x52] sm:$0xff]
        %s994 = scalar_lea.vmem %s3, 768
        %v995 = vld [vmem:[%s994] sm:$0xff]
        %v996 = vld [vmem:[%s994 + $0x8] sm:$0xff]
        %v997 = vld [vmem:[%s994 + $0x10] sm:$0xff]
        %v998 = vld [vmem:[%s994 + $0x18] sm:$0xff]
        %v999 = vld [vmem:[%s994 + $0x20] sm:$0xff]
        %v1000 = vld [vmem:[%s994 + $0x28] sm:$0xff]
        %v1001 = vld [vmem:[%s994 + $0x30] sm:$0xff]
        %v1002 = vld [vmem:[%s994 + $0x38] sm:$0xff]
        %v1003 = vld [vmem:[%s994 + $0x40] sm:$0xff]
        %v1004 = vld [vmem:[%s994 + $0x48] sm:$0xff]
        %v1005 = vld [vmem:[%s994 + $0x50] sm:$0xff]
        %v1006 = vld [vmem:[%s994 + $0x58] sm:$0xff]
        %v1007 = vld [vmem:[%s994 + $0x60] sm:$0xff]
        %v1008 = vld [vmem:[%s994 + $0x68] sm:$0xff]
        %v1009 = vld [vmem:[%s994 + $0x70] sm:$0xff]
        %v1010 = vld [vmem:[%s994 + $0x78] sm:$0xff]
        %v1011 = vld [vmem:[%s994 + $0x80] sm:$0xff]
        %v1012 = vld [vmem:[%s994 + $0x88] sm:$0xff]
        %v1013 = vld [vmem:[%s994 + $0x90] sm:$0xff]
        %v1014 = vld [vmem:[%s994 + $0x98] sm:$0xff]
        %v1015 = vld [vmem:[%s994 + $0xa0] sm:$0xff]
        %v1016 = vld [vmem:[%s994 + $0xa8] sm:$0xff]
        %v1017 = vld [vmem:[%s994 + $0xb0] sm:$0xff]
        %v1018 = vld [vmem:[%s994 + $0xb8] sm:$0xff]
        %v1019 = vld [vmem:[%s994 + $0xc0] sm:$0xff]
        %v1020 = vld [vmem:[%s994 + $0xc8] sm:$0xff]
        %v1021 = vld [vmem:[%s994 + $0xd0] sm:$0xff]
        %v1022 = vld [vmem:[%s994 + $0xd8] sm:$0xff]
        %v1023 = vld [vmem:[%s994 + $0xe0] sm:$0xff]
        %v1024 = vld [vmem:[%s994 + $0xe8] sm:$0xff]
        %v1025 = vld [vmem:[%s994 + $0xf0] sm:$0xff]
        %v1026 = vld [vmem:[%s994 + $0xf8] sm:$0xff]
        %v1027 = vld [vmem:[%s994 + $0x100] sm:$0xff]
        %v1028 = vld [vmem:[%s994 + $0x108] sm:$0xff]
        %v1029 = vld [vmem:[%s994 + $0x110] sm:$0xff]
        %v1030 = vld [vmem:[%s994 + $0x118] sm:$0xff]
        %v1031 = vld [vmem:[%s994 + $0x120] sm:$0xff]
        %v1032 = vld [vmem:[%s994 + $0x128] sm:$0xff]
        %v1033 = vld [vmem:[%s994 + $0x130] sm:$0xff]
        %v1034 = vld [vmem:[%s994 + $0x138] sm:$0xff]
        %v1035 = vld [vmem:[%s994 + $0x140] sm:$0xff]
        %v1036 = vld [vmem:[%s994 + $0x148] sm:$0xff]
        %v1037 = vld [vmem:[%s994 + $0x150] sm:$0xff]
        %v1038 = vld [vmem:[%s994 + $0x158] sm:$0xff]
        %v1039 = vld [vmem:[%s994 + $0x160] sm:$0xff]
        %v1040 = vld [vmem:[%s994 + $0x168] sm:$0xff]
        %v1041 = vld [vmem:[%s994 + $0x170] sm:$0xff]
        %v1042 = vld [vmem:[%s994 + $0x178] sm:$0xff]
        %1043 = vmatprep.subr.mxu0 0.0
        %1044 = vmatpush1.msra.mxu0 %v1010
        %1045 = vmatprep.subr.mxu0 0.0
        %1046 = vmatpush1.msra.mxu0 %v1009
        %1047 = vmatprep.subr.mxu0 0.0
        %1048 = vmatpush1.msra.mxu0 %v1008
        %1049 = vmatprep.subr.mxu0 0.0
        %1050 = vmatpush1.msra.mxu0 %v1007
        %1051 = vmatprep.subr.mxu0 0.0
        %1052 = vmatpush1.msra.mxu0 %v1006
        %1053 = vmatprep.subr.mxu0 0.0
        %1054 = vmatpush1.msra.mxu0 %v1005
        %1055 = vmatprep.subr.mxu0 0.0
        %1056 = vmatpush1.msra.mxu0 %v1004
        %1057 = vmatprep.subr.mxu0 0.0
        %1058 = vmatpush1.msra.mxu0 %v1003
        %1059 = vmatprep.subr.mxu0 0.0
        %1060 = vmatpush1.msra.mxu0 %v1002
        %1061 = vmatprep.subr.mxu0 0.0
        %1062 = vmatpush1.msra.mxu0 %v1001
        %1063 = vmatprep.subr.mxu0 0.0
        %1064 = vmatpush1.msra.mxu0 %v1000
        %1065 = vmatprep.subr.mxu0 0.0
        %1066 = vmatpush1.msra.mxu0 %v999
        %1067 = vmatprep.subr.mxu0 0.0
        %1068 = vmatpush1.msra.mxu0 %v998
        %1069 = vmatprep.subr.mxu0 0.0
        %1070 = vmatpush1.msra.mxu0 %v997
        %1071 = vmatprep.subr.mxu0 0.0
        %1072 = vmatpush1.msra.mxu0 %v996
        %1073 = vmatprep.subr.mxu0 0.0
        %1074 = vmatpush1.msra.mxu0 %v995
        %1075 = vmatprep.subr.mxu0 0.0
        %1076 = vmatpush2.msra.mxu0 %v1026
        %1077 = vmatprep.subr.mxu0 0.0
        %1078 = vmatpush2.msra.mxu0 %v1025
        %1079 = vmatprep.subr.mxu0 0.0
        %1080 = vmatpush2.msra.mxu0 %v1024
        %1081 = vmatprep.subr.mxu0 0.0
        %1082 = vmatpush2.msra.mxu0 %v1023
        %1083 = vmatprep.subr.mxu0 0.0
        %1084 = vmatpush2.msra.mxu0 %v1022
        %1085 = vmatprep.subr.mxu0 0.0
        %1086 = vmatpush2.msra.mxu0 %v1021
        %1087 = vmatprep.subr.mxu0 0.0
        %1088 = vmatpush2.msra.mxu0 %v1020
        %1089 = vmatprep.subr.mxu0 0.0
        %1090 = vmatpush2.msra.mxu0 %v1019
        %1091 = vmatprep.subr.mxu0 0.0
        %1092 = vmatpush2.msra.mxu0 %v1018
        %1093 = vmatprep.subr.mxu0 0.0
        %1094 = vmatpush2.msra.mxu0 %v1017
        %1095 = vmatprep.subr.mxu0 0.0
        %1096 = vmatpush2.msra.mxu0 %v1016
        %1097 = vmatprep.subr.mxu0 0.0
        %1098 = vmatpush2.msra.mxu0 %v1015
        %1099 = vmatprep.subr.mxu0 0.0
        %1100 = vmatpush2.msra.mxu0 %v1014
        %1101 = vmatprep.subr.mxu0 0.0
        %1102 = vmatpush2.msra.mxu0 %v1013
        %1103 = vmatprep.subr.mxu0 0.0
        %1104 = vmatpush2.msra.mxu0 %v1012
        %1105 = vmatprep.subr.mxu0 0.0
        %1106 = vmatpush2.msra.mxu0 %v1011
        %1107 = vmatprep.mubr.f32.mxu0 %v978
        %1108 = vmatmul.mubr.f32.gmra.mxu0 %v970
        %v1109 = vpop.f32.mrf.mxu0
        %v1110 = vadd.f32 0.0, %v1109
        %v1111 = vpop.f32.mrf.mxu0
        %1112 = vmatprep.mubr.f32.mxu0 %v979
        %1113 = vmatmul.mubr.f32.gmra.mxu0 %v971
        %v1114 = vpop.f32.mrf.mxu0
        %v1115 = vadd.f32 0.0, %v1114
        %v1116 = vpop.f32.mrf.mxu0
        %1117 = vmatprep.mubr.f32.mxu0 %v980
        %1118 = vmatmul.mubr.f32.gmra.mxu0 %v972
        %v1119 = vpop.f32.mrf.mxu0
        %v1120 = vadd.f32 0.0, %v1119
        %v1121 = vpop.f32.mrf.mxu0
        %1122 = vmatprep.mubr.f32.mxu0 %v981
        %1123 = vmatmul.mubr.f32.gmra.mxu0 %v973
        %v1124 = vpop.f32.mrf.mxu0
        %v1125 = vadd.f32 0.0, %v1124
        %v1126 = vpop.f32.mrf.mxu0
        %1127 = vmatprep.mubr.f32.mxu0 %v982
        %1128 = vmatmul.mubr.f32.gmra.mxu0 %v974
        %v1129 = vpop.f32.mrf.mxu0
        %v1130 = vadd.f32 0.0, %v1129
        %v1131 = vpop.f32.mrf.mxu0
        %1132 = vmatprep.mubr.f32.mxu0 %v983
        %1133 = vmatmul.mubr.f32.gmra.mxu0 %v975
        %v1134 = vpop.f32.mrf.mxu0
        %v1135 = vadd.f32 0.0, %v1134
        %v1136 = vpop.f32.mrf.mxu0
        %1137 = vmatprep.mubr.f32.mxu0 %v984
        %1138 = vmatmul.mubr.f32.gmra.mxu0 %v976
        %v1139 = vpop.f32.mrf.mxu0
        %v1140 = vadd.f32 0.0, %v1139
        %v1141 = vpop.f32.mrf.mxu0
        %1142 = vmatprep.mubr.f32.mxu0 %v985
        %1143 = vmatmul.mubr.f32.gmra.mxu0 %v977
        %v1144 = vpop.f32.mrf.mxu0
        %v1145 = vadd.f32 0.0, %v1144
        %v1146 = vpop.f32.mrf.mxu0
        %1147 = vdwg.mxu0
        %1148 = vmatprep.subr.mxu0 0.0
        %1149 = vmatpush1.msra.mxu0 %v1042
        %1150 = vmatprep.subr.mxu0 0.0
        %1151 = vmatpush1.msra.mxu0 %v1041
        %1152 = vmatprep.subr.mxu0 0.0
        %1153 = vmatpush1.msra.mxu0 %v1040
        %1154 = vmatprep.subr.mxu0 0.0
        %1155 = vmatpush1.msra.mxu0 %v1039
        %1156 = vmatprep.subr.mxu0 0.0
        %1157 = vmatpush1.msra.mxu0 %v1038
        %1158 = vmatprep.subr.mxu0 0.0
        %1159 = vmatpush1.msra.mxu0 %v1037
        %1160 = vmatprep.subr.mxu0 0.0
        %1161 = vmatpush1.msra.mxu0 %v1036
        %1162 = vmatprep.subr.mxu0 0.0
        %1163 = vmatpush1.msra.mxu0 %v1035
        %1164 = vmatprep.subr.mxu0 0.0
        %1165 = vmatpush1.msra.mxu0 %v1034
        %1166 = vmatprep.subr.mxu0 0.0
        %1167 = vmatpush1.msra.mxu0 %v1033
        %1168 = vmatprep.subr.mxu0 0.0
        %1169 = vmatpush1.msra.mxu0 %v1032
        %1170 = vmatprep.subr.mxu0 0.0
        %1171 = vmatpush1.msra.mxu0 %v1031
        %1172 = vmatprep.subr.mxu0 0.0
        %1173 = vmatpush1.msra.mxu0 %v1030
        %1174 = vmatprep.subr.mxu0 0.0
        %1175 = vmatpush1.msra.mxu0 %v1029
        %1176 = vmatprep.subr.mxu0 0.0
        %1177 = vmatpush1.msra.mxu0 %v1028
        %1178 = vmatprep.subr.mxu0 0.0
        %1179 = vmatpush1.msra.mxu0 %v1027
        %1180 = vmatprep.subr.mxu0 0.0
        %1181 = vmatpush2.msra.mxu0 0.0
        %1182 = vmatprep.subr.mxu0 0.0
        %1183 = vmatpush2.msra.mxu0 0.0
        %1184 = vmatprep.subr.mxu0 0.0
        %1185 = vmatpush2.msra.mxu0 0.0
        %1186 = vmatprep.subr.mxu0 0.0
        %1187 = vmatpush2.msra.mxu0 0.0
        %1188 = vmatprep.subr.mxu0 0.0
        %1189 = vmatpush2.msra.mxu0 0.0
        %1190 = vmatprep.subr.mxu0 0.0
        %1191 = vmatpush2.msra.mxu0 0.0
        %1192 = vmatprep.subr.mxu0 0.0
        %1193 = vmatpush2.msra.mxu0 0.0
        %1194 = vmatprep.subr.mxu0 0.0
        %1195 = vmatpush2.msra.mxu0 0.0
        %1196 = vmatprep.subr.mxu0 0.0
        %1197 = vmatpush2.msra.mxu0 0.0
        %1198 = vmatprep.subr.mxu0 0.0
        %1199 = vmatpush2.msra.mxu0 0.0
        %1200 = vmatprep.subr.mxu0 0.0
        %1201 = vmatpush2.msra.mxu0 0.0
        %1202 = vmatprep.subr.mxu0 0.0
        %1203 = vmatpush2.msra.mxu0 0.0
        %1204 = vmatprep.subr.mxu0 0.0
        %1205 = vmatpush2.msra.mxu0 0.0
        %1206 = vmatprep.subr.mxu0 0.0
        %1207 = vmatpush2.msra.mxu0 0.0
        %1208 = vmatprep.subr.mxu0 0.0
        %1209 = vmatpush2.msra.mxu0 0.0
        %1210 = vmatprep.subr.mxu0 0.0
        %1211 = vmatpush2.msra.mxu0 0.0
        %1212 = vmatprep.mubr.f32.mxu0 0.0
        %1213 = vmatmul.mubr.f32.gmra.mxu0 %v986
        %v1214 = vpop.f32.mrf.mxu0
        %v1215 = vadd.f32 %v1110, %v1214
        %v1216 = vpop.f32.mrf.mxu0
        %1217 = vmatprep.mubr.f32.mxu0 0.0
        %1218 = vmatmul.mubr.f32.gmra.mxu0 %v987
        %v1219 = vpop.f32.mrf.mxu0
        %v1220 = vadd.f32 %v1115, %v1219
        %v1221 = vpop.f32.mrf.mxu0
        %1222 = vmatprep.mubr.f32.mxu0 0.0
        %1223 = vmatmul.mubr.f32.gmra.mxu0 %v988
        %v1224 = vpop.f32.mrf.mxu0
        %v1225 = vadd.f32 %v1120, %v1224
        %v1226 = vpop.f32.mrf.mxu0
        %1227 = vmatprep.mubr.f32.mxu0 0.0
        %1228 = vmatmul.mubr.f32.gmra.mxu0 %v989
        %v1229 = vpop.f32.mrf.mxu0
        %v1230 = vadd.f32 %v1125, %v1229
        %v1231 = vpop.f32.mrf.mxu0
        %1232 = vmatprep.mubr.f32.mxu0 0.0
        %1233 = vmatmul.mubr.f32.gmra.mxu0 %v990
        %v1234 = vpop.f32.mrf.mxu0
        %v1235 = vadd.f32 %v1130, %v1234
        %v1236 = vpop.f32.mrf.mxu0
        %1237 = vmatprep.mubr.f32.mxu0 0.0
        %1238 = vmatmul.mubr.f32.gmra.mxu0 %v991
        %v1239 = vpop.f32.mrf.mxu0
        %v1240 = vadd.f32 %v1135, %v1239
        %v1241 = vpop.f32.mrf.mxu0
        %1242 = vmatprep.mubr.f32.mxu0 0.0
        %1243 = vmatmul.mubr.f32.gmra.mxu0 %v992
        %v1244 = vpop.f32.mrf.mxu0
        %v1245 = vadd.f32 %v1140, %v1244
        %v1246 = vpop.f32.mrf.mxu0
        %1247 = vmatprep.mubr.f32.mxu0 0.0
        %1248 = vmatmul.mubr.f32.gmra.mxu0 %v993
        %v1249 = vpop.f32.mrf.mxu0
        %v1250 = vadd.f32 %v1145, %v1249
        %v1251 = vpop.f32.mrf.mxu0
        %1252 = vdwg.mxu0
        %v1253 = vadd.f32 %v931, %v1215
        %v1254 = vadd.f32 %v936, %v1220
        %v1255 = vadd.f32 %v941, %v1225
        %v1256 = vadd.f32 %v946, %v1230
        %v1257 = vadd.f32 %v951, %v1235
        %v1258 = vadd.f32 %v956, %v1240
        %v1259 = vadd.f32 %v961, %v1245
        %v1260 = vadd.f32 %v966, %v1250
        %v1261 = vmul.f32 %v1253, 0.5
        %v1262 = vmul.f32 %v1254, 0.5
        %v1263 = vmul.f32 %v1255, 0.5
        %v1264 = vmul.f32 %v1256, 0.5
        %v1265 = vmul.f32 %v1257, 0.5
        %v1266 = vmul.f32 %v1258, 0.5
        %v1267 = vmul.f32 %v1259, 0.5
        %v1268 = vmul.f32 %v1260, 0.5
        %v1269 = vmul.f32 %v1253, 0.70710677
        %v1270 = vmul.f32 %v1254, 0.70710677
        %v1271 = vmul.f32 %v1255, 0.70710677
        %v1272 = vmul.f32 %v1256, 0.70710677
        %v1273 = vmul.f32 %v1257, 0.70710677
        %v1274 = vmul.f32 %v1258, 0.70710677
        %v1275 = vmul.f32 %v1259, 0.70710677
        %v1276 = vmul.f32 %v1260, 0.70710677
        %v1277 = verf.f32.pop %v1269
        %v1278 = verf.f32.pop %v1270
        %v1279 = verf.f32.pop %v1271
        %v1280 = verf.f32.pop %v1272
        %v1281 = verf.f32.pop %v1273
        %v1282 = verf.f32.pop %v1274
        %v1283 = verf.f32.pop %v1275
        %v1284 = verf.f32.pop %v1276
        %v1285 = vadd.f32 %v1277, 1.0
        %v1286 = vadd.f32 %v1278, 1.0
        %v1287 = vadd.f32 %v1279, 1.0
        %v1288 = vadd.f32 %v1280, 1.0
        %v1289 = vadd.f32 %v1281, 1.0
        %v1290 = vadd.f32 %v1282, 1.0
        %v1291 = vadd.f32 %v1283, 1.0
        %v1292 = vadd.f32 %v1284, 1.0
        %v1293 = vmul.f32 %v1261, %v1285
        %v1294 = vmul.f32 %v1262, %v1286
        %v1295 = vmul.f32 %v1263, %v1287
        %v1296 = vmul.f32 %v1264, %v1288
        %v1297 = vmul.f32 %v1265, %v1289
        %v1298 = vmul.f32 %v1266, %v1290
        %v1299 = vmul.f32 %v1267, %v1291
        %v1300 = vmul.f32 %v1268, %v1292
        %1301 = vst [vmem:[%s307] sm:$0xff] %v1293
        %1302 = vst [vmem:[%s307 + $0x8] sm:$0xff] %v1294
        %1303 = vst [vmem:[%s307 + $0x10] sm:$0xff] %v1295
        %1304 = vst [vmem:[%s307 + $0x18] sm:$0xff] %v1296
        %1305 = vst [vmem:[%s307 + $0x20] sm:$0xff] %v1297
        %1306 = vst [vmem:[%s307 + $0x28] sm:$0xff] %v1298
        %1307 = vst [vmem:[%s307 + $0x30] sm:$0xff] %v1299
        %1308 = vst [vmem:[%s307 + $0x38] sm:$0xff] %v1300
        %s1309 = sand.u32 %s161, 1
        %s1310 = scalar_lea.sflag [#allocation4], %s1309
        %s1311 = sand.u32 %s161, 1
        %s1312 = smul.addr %s1311, 64
        %s1313 = scalar_lea.vmem [#allocation3], %s1312
        // Predicated region
        $region37: #{conv_module_forward.1} parent=35 // pred_check
          %p1314 = pneg %p171
        $region38: #{conv_module_forward.1} parent=35 // pred_check_branch
          %1316 = sbr.rel (%p1314) target = $region40
        $region39: #{conv_module_forward.1} parent=35 // pred_region
          %s1317 = smul.u32 8, %s23
          %s1319 = ssub.s32 1024, 1024
          %1320 = vsyncadd %s1310, %s1319
          %s1321 = smul.addr %s22, 32
          %s1322 = sadd.s32 %s1317, %s1321
          %s1323 = smul.addr %s1322, 128
          %s1324 = scalar_lea.hbm %s4, %s1323
          %s1325 = sshll.u32 %s1313, 4
          %s1326 = int_to_ptr.vmem [resolvable:$true] %s1325
          %1331 = dma.vmem_to_hbm [thread:$0]  %s1326, 1024, %s1324, %s1310, 128, 128, 8
        $region40: #{conv_module_forward.1} parent=35 // pred_fallthru
          _
      $region36: #{conv_module_forward.1} parent=5 // pred_fallthru
        _
      %p1332 = scmp.le.s32.totalorder 2, %s13
      // Predicated region
      $region41: #{conv_module_forward.1} parent=5 // pred_check
        %p1333 = pneg %p1332
      $region42: #{conv_module_forward.1} parent=5 // pred_check_branch
        %1335 = sbr.rel (%p1333) target = $region44
      $region43: #{conv_module_forward.1} parent=5 // pred_region
        %s1336 = ssub.s32 %s13, 2
        // Predicated region
        $region45: #{conv_module_forward.1} parent=43 // pred_check
          %p1337 = pneg %p177
        $region46: #{conv_module_forward.1} parent=43 // pred_check_branch
          %1339 = sbr.rel (%p1337) target = $region48
        $region47: #{conv_module_forward.1} parent=43 // pred_region
          %s1340 = sand.u32 %s162, 1
          %s1341 = scalar_lea.sflag [#allocation4], %s1340
          %s1342 = sand.u32 %s162, 1
          %s1343 = smul.addr %s1342, 64
          %s1344 = scalar_lea.vmem [#allocation3], %s1343
          %1345 = dma.done %s1341, 1024
        $region48: #{conv_module_forward.1} parent=43 // pred_fallthru
          _
      $region44: #{conv_module_forward.1} parent=5 // pred_fallthru
        _
    $region6: #{conv_module_forward.1} parent=1 // loop_footer
      %s17 = sadd.s32 1, %s13
    $region7: #{conv_module_forward.1} parent=1 // loop_footer_branch
      %12 = sbr.rel target = $region3
    $region8: #{conv_module_forward.1} parent=1 // loop_exit
      _
    %1346 = vsyncpa [#allocation4], 1
    %s1347 = scalar_lea.sflag [#allocation4], 1
    %1348 = vsyncpa %s1347, 1

</llo_original>
